<compile_context>
chip_gen: v6e
topology: v6e:2x2x1
jax: 0.10.0
libtpu: 0.0.40
codegen_flags: <defaults>
</compile_context>

<pallas_src>
from functools import partial

import jax
import jax.numpy as jnp
import numpy as np
from jax import lax
from jax.experimental import pallas as pl
from jax.experimental.pallas import tpu as pltpu


def _pixel_shuffle3d_kernel(perm_ref, x_ref, o_ref, *, r, H, W, d_blk,
                            compute_dtype, precision):
    # perm_ref: (r*W, r*W) one-hot, perm[rw*W + w, w*r + rw] = 1 (resident).
    # x_ref:    (1, r^3, d_blk, H, W)
    # o_ref:    (1, 1, d_blk, r, H, r*r*W), last-dim column order (rh, w, rw).
    Wr = W * r
    perm = perm_ref[...]
    # r^2 bodies only (not d_blk*r): each one is a large, MXU-filling matmul.
    for rd in range(r):
        for rh in range(r):
            base = rd * r * r + rh * r
            # The r (d_blk, H, W) planes (rw = 0..r-1) for this (rd, rh),
            # concatenated along lanes: column index = rw*W + w.
            lhs = jnp.concatenate(
                [x_ref[0, base + rw].astype(compute_dtype) for rw in range(r)],
                axis=-1)                                     # (d_blk, H, r*W)
            # Batch all d_blk*H rows into one MXU call.
            lhs2 = lhs.reshape(d_blk * H, r * W)
            t = jnp.dot(lhs2, perm,
                        preferred_element_type=jnp.float32,
                        precision=precision)                 # (d_blk*H, Wr)
            # One contiguous slab store per (rd, rh).
            o_ref[0, 0, :, rd, :, rh * Wr:(rh + 1) * Wr] = (
                t.reshape(d_blk, H, Wr).astype(o_ref.dtype))


def pixel_shuffle3d(x, upscale_factor):
    r = int(upscale_factor)
    B, C, D, H, W = x.shape
    assert C % (r ** 3) == 0, "channels must be divisible by upscale_factor**3"
    c_out = C // (r ** 3)
    if r == 1:
        return x

    Wr = W * r
    K = r * r * W
    itemsize = jnp.dtype(x.dtype).itemsize

    # Native-dtype matmul for bf16 (single MXU pass; one-hot selection exact);
    # f32 uses HIGHEST (exact 3-way bf16 split); everything else routes via f32.
    if x.dtype == jnp.bfloat16:
        compute_dtype = jnp.bfloat16
        precision = None
    else:
        # TODO(synk): non-float dtypes (|int| >= 2^24, NaN payloads, -0.0) are
        # not bit-preserved by the f32 MXU permutation path.
        compute_dtype = jnp.float32
        precision = lax.Precision.HIGHEST

    # One-hot width-interleave permutation, identical for every rh/rd/depth:
    #   perm[rw*W + w, w*r + rw] = 1
    rows = np.arange(Wr)
    cols = (rows % W) * r + rows // W
    perm_np = np.zeros((Wr, Wr), dtype=np.float32)
    perm_np[rows, cols] = 1.0
    perm = jnp.asarray(perm_np, dtype=compute_dtype)

    # Per-generation VMEM budget (v5e/v6e: 128 MiB, v7x: 64 MiB per TC); raise
    # the scoped limit explicitly so v5e's 16 MiB default does not cap blocks.
    try:
        vmem_cap = int(pltpu.get_tpu_info().vmem_capacity_bytes)
    except Exception:
        vmem_cap = 64 << 20          # conservative fallback (v7x-sized)
    vmem_limit = int(min(max(vmem_cap // 2, 32 << 20), 64 << 20))

    # VMEM per depth slice: input + output blocks (double-buffered => 4x) plus
    # ~2x headroom for in-kernel f32 lhs/result slabs => ~8x factor overall.
    bytes_per_depth = (r ** 3) * H * W * itemsize
    d_blk = int(vmem_limit // (8 * bytes_per_depth))
    d_blk = max(1, min(D, d_blk))

    kernel = partial(_pixel_shuffle3d_kernel, r=r, H=H, W=W, d_blk=d_blk,
                     compute_dtype=compute_dtype, precision=precision)

    out6 = pl.pallas_call(
        kernel,
        out_shape=jax.ShapeDtypeStruct((B, c_out, D, r, H, K), x.dtype),
        grid=(B, c_out, pl.cdiv(D, d_blk)),
        in_specs=[
            # Resident permutation matrix: constant index_map => fetched once,
            # never rebuilt / re-DMA'd per step.
            pl.BlockSpec((Wr, Wr), lambda b, c, d: (0, 0)),
            pl.BlockSpec((1, r ** 3, d_blk, H, W),
                         lambda b, c, d: (b, c, d, 0, 0)),
        ],
        out_specs=pl.BlockSpec((1, 1, d_blk, r, H, K),
                               lambda b, c, d: (b, c, d, 0, 0, 0)),
        compiler_params=pltpu.CompilerParams(
            dimension_semantics=("parallel", "parallel", "parallel"),
            vmem_limit_bytes=vmem_limit),
    )(perm, x)

    # (B, c_out, D, rd, H, (rh, w, rw)) -> (B, c_out, D*r, H*r, W*r):
    # identical linear element order => free reshape (no data movement).
    return out6.reshape(B, c_out, D * r, H * r, W * r)


def ref_pixel_shuffle3d(x, r):
    # Pure-JAX reference mirroring the PyTorch forward exactly.
    B, C, D, H, W = x.shape
    c = C // (r ** 3)
    xv = x.reshape(B, c, r, r, r, D, H, W)
    xs = jnp.transpose(xv, (0, 1, 5, 2, 6, 3, 7, 4))
    return xs.reshape(B, c, D * r, H * r, W * r)


if __name__ == "__main__":
    key = jax.random.PRNGKey(0)
    r = 2
    B, c_out, D, H, W = 2, 2, 4, 8, 8
    C = c_out * r ** 3                      # 16
    x = jax.random.normal(key, (B, C, D, H, W), dtype=jnp.float32)

    y = pixel_shuffle3d(x, r)
    y = jax.block_until_ready(y)

    y_ref = ref_pixel_shuffle3d(x, r)
    np.testing.assert_allclose(np.asarray(y), np.asarray(y_ref),
                               rtol=1e-5, atol=1e-5)
    print("KERNEL_OK")
</pallas_src>

<mosaic_0001>
module attributes {stable_mosaic.version = 11 : i64} {
  func.func @_pixel_shuffle3d_kernel(%arg0: i32, %arg1: i32, %arg2: i32, %arg3: memref<16x16xf32, #tpu.memory_space<vmem>>, %arg4: memref<1x8x4x8x8xf32, #tpu.memory_space<vmem>>, %arg5: memref<1x1x4x2x8x32xf32, #tpu.memory_space<vmem>>) attributes {dimension_semantics = [#tpu.dimension_semantics<parallel>, #tpu.dimension_semantics<parallel>, #tpu.dimension_semantics<parallel>], iteration_bounds = array<i64: 2, 2, 1>, scalar_prefetch = 0 : i64, scratch_operands = 0 : i64, tpu.core_type = #tpu.core_type<tc>, window_params = [{pipeline_mode = #tpu.pipeline_mode<synchronous>, transform_indices = @transform_0, window_bounds = array<i64: 16, 16>}, {transform_indices = @transform_1, window_bounds = array<i64: 1, 8, 4, 8, 8>}, {transform_indices = @transform_2, window_bounds = array<i64: 1, 1, 4, 2, 8, 32>}]} {
    %c0 = arith.constant 0 : index
    %c0_0 = arith.constant 0 : index
    %0 = vector.load %arg3[%c0, %c0_0] : memref<16x16xf32, #tpu.memory_space<vmem>>, vector<16x16xf32>
    %c0_1 = arith.constant 0 : index
    %c0_2 = arith.constant 0 : index
    %c0_3 = arith.constant 0 : index
    %c0_4 = arith.constant 0 : index
    %c0_5 = arith.constant 0 : index
    %1 = vector.load %arg4[%c0_1, %c0_2, %c0_3, %c0_4, %c0_5] : memref<1x8x4x8x8xf32, #tpu.memory_space<vmem>>, vector<1x1x4x8x8xf32>
    %2 = vector.shape_cast %1 : vector<1x1x4x8x8xf32> to vector<4x8x8xf32>
    %c0_6 = arith.constant 0 : index
    %c1 = arith.constant 1 : index
    %c0_7 = arith.constant 0 : index
    %c0_8 = arith.constant 0 : index
    %c0_9 = arith.constant 0 : index
    %3 = vector.load %arg4[%c0_6, %c1, %c0_7, %c0_8, %c0_9] : memref<1x8x4x8x8xf32, #tpu.memory_space<vmem>>, vector<1x1x4x8x8xf32>
    %4 = vector.shape_cast %3 : vector<1x1x4x8x8xf32> to vector<4x8x8xf32>
    %5 = tpu.concatenate %2, %4 in 2 : vector<4x8x8xf32>, vector<4x8x8xf32> -> vector<4x8x16xf32>
    %6 = vector.shape_cast %5 : vector<4x8x16xf32> to vector<32x16xf32>
    %cst = arith.constant dense<0.000000e+00> : vector<32x16xf32>
    %7 = tpu.matmul %6, %0, %cst {dimension_numbers = #tpu.dot_dimension_numbers<[1], [0], [0], [1], [0, 0, 1, 1], [], []>, precision = #tpu.contract_precision<fp32>} : vector<32x16xf32>, vector<16x16xf32>, vector<32x16xf32> -> vector<32x16xf32>
    %8 = vector.shape_cast %7 : vector<32x16xf32> to vector<4x8x16xf32>
    %c0_10 = arith.constant 0 : index
    %c0_11 = arith.constant 0 : index
    %c0_12 = arith.constant 0 : index
    %c0_13 = arith.constant 0 : index
    %c0_14 = arith.constant 0 : index
    %c0_15 = arith.constant 0 : index
    %9 = vector.load %arg5[%c0_10, %c0_11, %c0_12, %c0_13, %c0_14, %c0_15] : memref<1x1x4x2x8x32xf32, #tpu.memory_space<vmem>>, vector<1x1x4x1x8x16xf32>
    %10 = vector.shape_cast %9 : vector<1x1x4x1x8x16xf32> to vector<4x8x16xf32>
    %11 = vector.shape_cast %8 : vector<4x8x16xf32> to vector<1x1x4x1x8x16xf32>
    tpu.vector_store %arg5[%c0_10, %c0_11, %c0_12, %c0_13, %c0_14, %c0_15], %11 {strides = array<i32>} : memref<1x1x4x2x8x32xf32, #tpu.memory_space<vmem>>, vector<1x1x4x1x8x16xf32>,
    %c0_16 = arith.constant 0 : index
    %c2 = arith.constant 2 : index
    %c0_17 = arith.constant 0 : index
    %c0_18 = arith.constant 0 : index
    %c0_19 = arith.constant 0 : index
    %12 = vector.load %arg4[%c0_16, %c2, %c0_17, %c0_18, %c0_19] : memref<1x8x4x8x8xf32, #tpu.memory_space<vmem>>, vector<1x1x4x8x8xf32>
    %13 = vector.shape_cast %12 : vector<1x1x4x8x8xf32> to vector<4x8x8xf32>
    %c0_20 = arith.constant 0 : index
    %c3 = arith.constant 3 : index
    %c0_21 = arith.constant 0 : index
    %c0_22 = arith.constant 0 : index
    %c0_23 = arith.constant 0 : index
    %14 = vector.load %arg4[%c0_20, %c3, %c0_21, %c0_22, %c0_23] : memref<1x8x4x8x8xf32, #tpu.memory_space<vmem>>, vector<1x1x4x8x8xf32>
    %15 = vector.shape_cast %14 : vector<1x1x4x8x8xf32> to vector<4x8x8xf32>
    %16 = tpu.concatenate %13, %15 in 2 : vector<4x8x8xf32>, vector<4x8x8xf32> -> vector<4x8x16xf32>
    %17 = vector.shape_cast %16 : vector<4x8x16xf32> to vector<32x16xf32>
    %cst_24 = arith.constant dense<0.000000e+00> : vector<32x16xf32>
    %18 = tpu.matmul %17, %0, %cst_24 {dimension_numbers = #tpu.dot_dimension_numbers<[1], [0], [0], [1], [0, 0, 1, 1], [], []>, precision = #tpu.contract_precision<fp32>} : vector<32x16xf32>, vector<16x16xf32>, vector<32x16xf32> -> vector<32x16xf32>
    %19 = vector.shape_cast %18 : vector<32x16xf32> to vector<4x8x16xf32>
    %c0_25 = arith.constant 0 : index
    %c0_26 = arith.constant 0 : index
    %c0_27 = arith.constant 0 : index
    %c0_28 = arith.constant 0 : index
    %c0_29 = arith.constant 0 : index
    %c16 = arith.constant 16 : index
    %20 = vector.load %arg5[%c0_25, %c0_26, %c0_27, %c0_28, %c0_29, %c16] : memref<1x1x4x2x8x32xf32, #tpu.memory_space<vmem>>, vector<1x1x4x1x8x16xf32>
    %21 = vector.shape_cast %20 : vector<1x1x4x1x8x16xf32> to vector<4x8x16xf32>
    %22 = vector.shape_cast %19 : vector<4x8x16xf32> to vector<1x1x4x1x8x16xf32>
    tpu.vector_store %arg5[%c0_25, %c0_26, %c0_27, %c0_28, %c0_29, %c16], %22 {strides = array<i32>} : memref<1x1x4x2x8x32xf32, #tpu.memory_space<vmem>>, vector<1x1x4x1x8x16xf32>,
    %c0_30 = arith.constant 0 : index
    %c4 = arith.constant 4 : index
    %c0_31 = arith.constant 0 : index
    %c0_32 = arith.constant 0 : index
    %c0_33 = arith.constant 0 : index
    %23 = vector.load %arg4[%c0_30, %c4, %c0_31, %c0_32, %c0_33] : memref<1x8x4x8x8xf32, #tpu.memory_space<vmem>>, vector<1x1x4x8x8xf32>
    %24 = vector.shape_cast %23 : vector<1x1x4x8x8xf32> to vector<4x8x8xf32>
    %c0_34 = arith.constant 0 : index
    %c5 = arith.constant 5 : index
    %c0_35 = arith.constant 0 : index
    %c0_36 = arith.constant 0 : index
    %c0_37 = arith.constant 0 : index
    %25 = vector.load %arg4[%c0_34, %c5, %c0_35, %c0_36, %c0_37] : memref<1x8x4x8x8xf32, #tpu.memory_space<vmem>>, vector<1x1x4x8x8xf32>
    %26 = vector.shape_cast %25 : vector<1x1x4x8x8xf32> to vector<4x8x8xf32>
    %27 = tpu.concatenate %24, %26 in 2 : vector<4x8x8xf32>, vector<4x8x8xf32> -> vector<4x8x16xf32>
    %28 = vector.shape_cast %27 : vector<4x8x16xf32> to vector<32x16xf32>
    %cst_38 = arith.constant dense<0.000000e+00> : vector<32x16xf32>
    %29 = tpu.matmul %28, %0, %cst_38 {dimension_numbers = #tpu.dot_dimension_numbers<[1], [0], [0], [1], [0, 0, 1, 1], [], []>, precision = #tpu.contract_precision<fp32>} : vector<32x16xf32>, vector<16x16xf32>, vector<32x16xf32> -> vector<32x16xf32>
    %30 = vector.shape_cast %29 : vector<32x16xf32> to vector<4x8x16xf32>
    %c0_39 = arith.constant 0 : index
    %c0_40 = arith.constant 0 : index
    %c0_41 = arith.constant 0 : index
    %c1_42 = arith.constant 1 : index
    %c0_43 = arith.constant 0 : index
    %c0_44 = arith.constant 0 : index
    %31 = vector.load %arg5[%c0_39, %c0_40, %c0_41, %c1_42, %c0_43, %c0_44] : memref<1x1x4x2x8x32xf32, #tpu.memory_space<vmem>>, vector<1x1x4x1x8x16xf32>
    %32 = vector.shape_cast %31 : vector<1x1x4x1x8x16xf32> to vector<4x8x16xf32>
    %33 = vector.shape_cast %30 : vector<4x8x16xf32> to vector<1x1x4x1x8x16xf32>
    tpu.vector_store %arg5[%c0_39, %c0_40, %c0_41, %c1_42, %c0_43, %c0_44], %33 {strides = array<i32>} : memref<1x1x4x2x8x32xf32, #tpu.memory_space<vmem>>, vector<1x1x4x1x8x16xf32>,
    %c0_45 = arith.constant 0 : index
    %c6 = arith.constant 6 : index
    %c0_46 = arith.constant 0 : index
    %c0_47 = arith.constant 0 : index
    %c0_48 = arith.constant 0 : index
    %34 = vector.load %arg4[%c0_45, %c6, %c0_46, %c0_47, %c0_48] : memref<1x8x4x8x8xf32, #tpu.memory_space<vmem>>, vector<1x1x4x8x8xf32>
    %35 = vector.shape_cast %34 : vector<1x1x4x8x8xf32> to vector<4x8x8xf32>
    %c0_49 = arith.constant 0 : index
    %c7 = arith.constant 7 : index
    %c0_50 = arith.constant 0 : index
    %c0_51 = arith.constant 0 : index
    %c0_52 = arith.constant 0 : index
    %36 = vector.load %arg4[%c0_49, %c7, %c0_50, %c0_51, %c0_52] : memref<1x8x4x8x8xf32, #tpu.memory_space<vmem>>, vector<1x1x4x8x8xf32>
    %37 = vector.shape_cast %36 : vector<1x1x4x8x8xf32> to vector<4x8x8xf32>
    %38 = tpu.concatenate %35, %37 in 2 : vector<4x8x8xf32>, vector<4x8x8xf32> -> vector<4x8x16xf32>
    %39 = vector.shape_cast %38 : vector<4x8x16xf32> to vector<32x16xf32>
    %cst_53 = arith.constant dense<0.000000e+00> : vector<32x16xf32>
    %40 = tpu.matmul %39, %0, %cst_53 {dimension_numbers = #tpu.dot_dimension_numbers<[1], [0], [0], [1], [0, 0, 1, 1], [], []>, precision = #tpu.contract_precision<fp32>} : vector<32x16xf32>, vector<16x16xf32>, vector<32x16xf32> -> vector<32x16xf32>
    %41 = vector.shape_cast %40 : vector<32x16xf32> to vector<4x8x16xf32>
    %c0_54 = arith.constant 0 : index
    %c0_55 = arith.constant 0 : index
    %c0_56 = arith.constant 0 : index
    %c1_57 = arith.constant 1 : index
    %c0_58 = arith.constant 0 : index
    %c16_59 = arith.constant 16 : index
    %42 = vector.load %arg5[%c0_54, %c0_55, %c0_56, %c1_57, %c0_58, %c16_59] : memref<1x1x4x2x8x32xf32, #tpu.memory_space<vmem>>, vector<1x1x4x1x8x16xf32>
    %43 = vector.shape_cast %42 : vector<1x1x4x1x8x16xf32> to vector<4x8x16xf32>
    %44 = vector.shape_cast %41 : vector<4x8x16xf32> to vector<1x1x4x1x8x16xf32>
    tpu.vector_store %arg5[%c0_54, %c0_55, %c0_56, %c1_57, %c0_58, %c16_59], %44 {strides = array<i32>} : memref<1x1x4x2x8x32xf32, #tpu.memory_space<vmem>>, vector<1x1x4x1x8x16xf32>,
    return
  }
  func.func @transform_0(%arg0: i32, %arg1: i32, %arg2: i32) -> (i32, i32) {
    %c0_i32 = arith.constant 0 : i32
    %c0_i32_0 = arith.constant 0 : i32
    %c0_i32_1 = arith.constant 0 : i32
    return %c0_i32, %c0_i32_0 : i32, i32
  }
  func.func @transform_1(%arg0: i32, %arg1: i32, %arg2: i32) -> (i32, i32, i32, i32, i32) {
    %c0_i32 = arith.constant 0 : i32
    %c0_i32_0 = arith.constant 0 : i32
    %c0_i32_1 = arith.constant 0 : i32
    return %arg0, %arg1, %arg2, %c0_i32, %c0_i32_0 : i32, i32, i32, i32, i32
  }
  func.func @transform_2(%arg0: i32, %arg1: i32, %arg2: i32) -> (i32, i32, i32, i32, i32, i32) {
    %c0_i32 = arith.constant 0 : i32
    %c0_i32_0 = arith.constant 0 : i32
    %c0_i32_1 = arith.constant 0 : i32
    %c0_i32_2 = arith.constant 0 : i32
    return %arg0, %arg1, %arg2, %c0_i32, %c0_i32_0, %c0_i32_1 : i32, i32, i32, i32, i32, i32
  }
}

</mosaic_0001>

<llo_original>
// kernel: tpu_custom_call.1
$region0: #{tpu_custom_call.1}
  #allocation0 [shape = 'u32[]', space=smem, size = 0x4, offset = 0x4, fixed_abs, tag = 'smem constant byte address 0x4 - core index']
  #allocation1 [shape = 'u32[144,128]{1,0:T(1,128)}', space=vmem, size = 0x12000, scoped, tag = 'internal scratch']
  %s0 = inlined_call_operand.vmem [shape: f32[16,16], index: 0, kind: input, shape index: {}]
  %s1 = inlined_call_operand.vmem [shape: f32[2,16,4,8,8], index: 1, kind: input, shape index: {}]
  %s2 = inlined_call_operand.hbm [shape: f32[2,2,4,2,8,32], index: 2, kind: output, shape index: {}]
  %s3 = sld [smem:[#allocation0]]
  $region41: #{tpu_custom_call.1} parent=0
    _
  %s5 = ssub.s32 1, %s3
  %s6 = scalar_select 0, %s5, %s3
  $region1: #{tpu_custom_call.1} parent=0
    #allocation2 [shape = 'u8[65536]{0}', space=vmem, size = 0x10000, scoped, tag = 'output window, operand 0']
    #allocation3 [shape = 's32[2]{0}', space=sflag, size = 0x8, scoped, tag = 'scoped memory for tpu_custom_call.1']
    %7 = vsyncpa [#allocation3], 0
    %s8 = scalar_lea.sflag [#allocation3], 1
    %9 = vsyncpa %s8, 0
    loop: start=0, step=1, limit=6
    $region2: #{tpu_custom_call.1} parent=1 // loop_pre_header
      _
    $region3: #{tpu_custom_call.1} parent=1 // loop_header
      %s11 = sphi 0, %s15
      %p12 = scmp.ge.s32.totalorder %s11, 6
      %s18 = sphi 0, %s37
      %s19 = sphi 0, %s33
      %s20 = sphi 0, %s29
      %s21 = sphi 0, %s18
      %s22 = sphi 0, %s19
      %s23 = sphi 0, %s20
      %s24 = sphi 0, %s21
      %s25 = sphi 0, %s22
      %s26 = sphi 0, %s23
      %s38 = sphi 0, %s38
      %s40 = sphi 0, %s38
      %s41 = sphi 0, %s40
      %s55 = sphi 0, %s41
      %s65 = sphi 0, %s67
      %s68 = sphi 0, %s65
      %s69 = sphi 0, %s68
      %s85 = sphi 0, %s69
      %s95 = sphi 0, %s97
      %s98 = sphi 0, %s95
      %s99 = sphi 0, %s98
      %s115 = sphi 0, %s99
    $region4: #{tpu_custom_call.1} parent=1 // loop_header_branch
      %14 = sbr.rel (%p12) target = $region8
    $region5: #{tpu_custom_call.1} parent=1 // loop_body
      %s16 = ssub.s32 %s11, 1
      %s17 = ssub.s32 %s11, 2
      %s27 = sadd.s32 1, %s20
      %p28 = scmp.ge.s32.totalorder %s27, 1
      %s29 = scalar_select %p28, 0, %s27
      %s30 = sadd.s32 1, %s19
      %s31 = scalar_select %p28, %s30, %s19
      %p32 = scmp.ge.s32.totalorder %s31, 2
      %s33 = scalar_select %p32, 0, %s31
      %s34 = sadd.s32 1, %s18
      %s35 = scalar_select %p32, %s34, %s18
      %p36 = scmp.ge.s32.totalorder %s35, 2
      %s37 = scalar_select %p36, 0, %s35
      %s39 = sadd.s32 %s38, 1
      %p42 = scmp.eq.s32.totalorder %s11, 3
      %p43 = scmp.ne.s32.totalorder %s38, %s40
      %p44 = scmp.eq.s32.totalorder %s11, 0
      %p45 = por %p43, %p44
      %p46 = scmp.ne.s32.totalorder %s38, %s40
      %p47 = scmp.eq.s32.totalorder %s16, 3
      %p48 = por %p46, %p47
      %p49 = scmp.ne.s32.totalorder %s40, %s41
      %p50 = scmp.eq.s32.totalorder %s16, 0
      %p51 = por %p49, %p50
      %p52 = scmp.ne.s32.totalorder %s40, %s41
      %p53 = scmp.eq.s32.totalorder %s17, 3
      %p54 = por %p52, %p53
      %p56 = scmp.ne.s32.totalorder %s41, %s55
      %p57 = scmp.eq.s32.totalorder %s17, 0
      %p58 = por %p56, %p57
      %s59 = ssub.s32 %s18, %s37
      %s60 = ssub.s32 %s19, %s33
      %s61 = sor.u32 %s59, %s60
      %s62 = ssub.s32 %s20, %s29
      %s63 = sor.u32 %s61, %s62
      %p64 = scmp.eq.s32.totalorder %s63, 0
      %s66 = sadd.s32 %s65, 1
      %s67 = scalar_select %p64, %s65, %s66
      %p70 = pneg %p64
      %p71 = scmp.eq.s32.totalorder %s11, 3
      %p72 = por %p70, %p71
      %p73 = scmp.ne.s32.totalorder %s65, %s68
      %p74 = scmp.eq.s32.totalorder %s11, 0
      %p75 = por %p73, %p74
      %p76 = scmp.ne.s32.totalorder %s65, %s68
      %p77 = scmp.eq.s32.totalorder %s16, 3
      %p78 = por %p76, %p77
      %p79 = scmp.ne.s32.totalorder %s68, %s69
      %p80 = scmp.eq.s32.totalorder %s16, 0
      %p81 = por %p79, %p80
      %p82 = scmp.ne.s32.totalorder %s68, %s69
      %p83 = scmp.eq.s32.totalorder %s17, 3
      %p84 = por %p82, %p83
      %p86 = scmp.ne.s32.totalorder %s69, %s85
      %p87 = scmp.eq.s32.totalorder %s17, 0
      %p88 = por %p86, %p87
      %s89 = ssub.s32 %s18, %s37
      %s90 = ssub.s32 %s19, %s33
      %s91 = sor.u32 %s89, %s90
      %s92 = ssub.s32 %s20, %s29
      %s93 = sor.u32 %s91, %s92
      %p94 = scmp.eq.s32.totalorder %s93, 0
      %s96 = sadd.s32 %s95, 1
      %s97 = scalar_select %p94, %s95, %s96
      %p100 = pneg %p94
      %p101 = scmp.eq.s32.totalorder %s11, 3
      %p102 = por %p100, %p101
      %p103 = scmp.ne.s32.totalorder %s95, %s98
      %p104 = scmp.eq.s32.totalorder %s11, 0
      %p105 = por %p103, %p104
      %p106 = scmp.ne.s32.totalorder %s95, %s98
      %p107 = scmp.eq.s32.totalorder %s16, 3
      %p108 = por %p106, %p107
      %p109 = scmp.ne.s32.totalorder %s98, %s99
      %p110 = scmp.eq.s32.totalorder %s16, 0
      %p111 = por %p109, %p110
      %p112 = scmp.ne.s32.totalorder %s98, %s99
      %p113 = scmp.eq.s32.totalorder %s17, 3
      %p114 = por %p112, %p113
      %p116 = scmp.ne.s32.totalorder %s99, %s115
      %p117 = scmp.eq.s32.totalorder %s17, 0
      %p118 = por %p116, %p117
      %p119 = scmp.le.s32.totalorder 1, %s11
      %p120 = scmp.lt.s32.totalorder %s11, 5
      %p121 = pnand %p119, %p120
      %p122 = pneg %p121
      // Predicated region
      $region9: #{tpu_custom_call.1} parent=5 // pred_check
        _
      $region10: #{tpu_custom_call.1} parent=5 // pred_check_branch
        %124 = sbr.rel (%p121) target = $region12
      $region11: #{tpu_custom_call.1} parent=5 // pred_region
        %s125 = ssub.s32 %s11, 1
        // Predicated region
        $region13: #{tpu_custom_call.1} parent=11 // pred_check
          %p126 = pneg %p51
        $region14: #{tpu_custom_call.1} parent=11 // pred_check_branch
          %128 = sbr.rel (%p126) target = $region16
        $region15: #{tpu_custom_call.1} parent=11 // pred_region
          _
        $region16: #{tpu_custom_call.1} parent=11 // pred_fallthru
          _
      $region12: #{tpu_custom_call.1} parent=5 // pred_fallthru
        _
      %p129 = scmp.lt.s32.totalorder %s11, 4
      // Predicated region
      $region17: #{tpu_custom_call.1} parent=5 // pred_check
        %p130 = pneg %p129
      $region18: #{tpu_custom_call.1} parent=5 // pred_check_branch
        %132 = sbr.rel (%p130) target = $region20
      $region19: #{tpu_custom_call.1} parent=5 // pred_region
        // Predicated region
        $region21: #{tpu_custom_call.1} parent=19 // pred_check
          %p133 = pneg %p75
        $region22: #{tpu_custom_call.1} parent=19 // pred_check_branch
          %135 = sbr.rel (%p133) target = $region24
        $region23: #{tpu_custom_call.1} parent=19 // pred_region
          %s136 = smul.u32 8, %s19
          %s137 = smul.u32 4, %s20
          %p138 = scmp.lt.s32.totalorder %s18, 1
          %s139 = scalar_select %p138, %s18, 1
          %p140 = scmp.lt.s32.totalorder %s136, 15
          %s141 = scalar_select %p140, %s136, 15
          %p142 = scmp.lt.s32.totalorder %s137, 3
          %s143 = scalar_select %p142, %s137, 3
          %s144 = smul.addr %s141, 4
          %s145 = sadd.s32 %s143, %s144
          %s146 = smul.addr %s139, 64
          %s147 = sadd.s32 %s145, %s146
          %s148 = smul.addr %s147, 8
          %s149 = scalar_lea.vmem %s1, %s148
          %s150 = smul.u32 8, %s19
          %s151 = smul.u32 4, %s20
        $region24: #{tpu_custom_call.1} parent=19 // pred_fallthru
          _
      $region20: #{tpu_custom_call.1} parent=5 // pred_fallthru
        _
      %p152 = scmp.le.s32.totalorder 1, %s11
      %p153 = scmp.lt.s32.totalorder %s11, 5
      %p154 = pnand %p152, %p153
      %p155 = pneg %p154
      // Predicated region
      $region25: #{tpu_custom_call.1} parent=5 // pred_check
        _
      $region26: #{tpu_custom_call.1} parent=5 // pred_check_branch
        %157 = sbr.rel (%p154) target = $region28
      $region27: #{tpu_custom_call.1} parent=5 // pred_region
        %s158 = ssub.s32 %s11, 1
        %p159 = pneg %p51
        %p160 = pneg %p48
        %s161 = smul.u32 8, %s22
        %s162 = smul.u32 4, %s23
        %p163 = scmp.lt.s32.totalorder %s21, 1
        %s164 = scalar_select %p163, %s21, 1
        %p165 = scmp.lt.s32.totalorder %s161, 15
        %s166 = scalar_select %p165, %s161, 15
        %p167 = scmp.lt.s32.totalorder %s162, 3
        %s168 = scalar_select %p167, %s162, 3
        %s169 = smul.addr %s166, 4
        %s170 = sadd.s32 %s168, %s169
        %s171 = smul.addr %s164, 64
        %s172 = sadd.s32 %s170, %s171
        %s173 = smul.addr %s172, 8
        %s174 = scalar_lea.vmem %s1, %s173
        %p175 = pneg %p81
        %p176 = pneg %p78
        %p177 = pneg %p111
        %p178 = pneg %p108
        %s179 = sand.u32 %s98, 1
        %s180 = scalar_lea.sflag [#allocation3], %s179
        %s181 = sand.u32 %s98, 1
        %s182 = smul.addr %s181, 64
        %s183 = scalar_lea.vmem [#allocation2], %s182
        %s184 = smul.u32 8, %s22
        %s185 = smul.u32 4, %s23
        %p186 = scmp.lt.s32.totalorder %s21, 1
        %s187 = scalar_select %p186, %s21, 1
        %p188 = scmp.lt.s32.totalorder %s184, 15
        %s189 = scalar_select %p188, %s184, 15
        %p190 = scmp.lt.s32.totalorder %s185, 3
        %s191 = scalar_select %p190, %s185, 3
        %s192 = smul.addr %s189, 4
        %s193 = sadd.s32 %s191, %s192
        %s194 = smul.addr %s187, 64
        %s195 = sadd.s32 %s193, %s194
        %s196 = smul.addr %s195, 8
        %s197 = scalar_lea.vmem %s1, %s196
        %s198 = smul.u32 8, %s22
        %s199 = smul.u32 4, %s23
        %s200 = smul.u32 4, %s23
        %v201 = vld [vmem:[%s0] sm:$0xff]
        %v202 = vld [vmem:[%s0 + $0x8] sm:$0xff]
        %v203 = vld [vmem:[%s197] sm:$0xff]
        %v204 = vld [vmem:[%s197 + $0x8] sm:$0xff]
        %v205 = vld [vmem:[%s197 + $0x10] sm:$0xff]
        %v206 = vld [vmem:[%s197 + $0x18] sm:$0xff]
        %s207 = scalar_lea.vmem %s197, 32
        %v208 = vld [vmem:[%s207] sm:$0xff]
        %v209 = vld [vmem:[%s207 + $0x8] sm:$0xff]
        %v210 = vld [vmem:[%s207 + $0x10] sm:$0xff]
        %v211 = vld [vmem:[%s207 + $0x18] sm:$0xff]
        %216 = vrot.lane.b32.xlu0 %v208, 8
        %v217 = vpop.permute.xlu0 %216
        %218 = vrot.lane.b32.xlu0 %v209, 8
        %v219 = vpop.permute.xlu0 %218
        %220 = vrot.lane.b32.xlu0 %v210, 8
        %v221 = vpop.permute.xlu0 %220
        %222 = vrot.lane.b32.xlu0 %v211, 8
        %v223 = vpop.permute.xlu0 %222
        %vm228 = vcmask 64512
        %v229 = vsel %vm228, %v203, %v217
        %v230 = vsel %vm228, %v204, %v219
        %v231 = vsel %vm228, %v205, %v221
        %v232 = vsel %vm228, %v206, %v223
        %vm233 = vcmask 130048
        %v235 = vsel %vm233, %v229, 0
        %v238 = vsel %vm233, %v230, 0
        %v241 = vsel %vm233, %v231, 0
        %v244 = vsel %vm233, %v232, 0
        %246 = vmatprep.subr.mxu0 0.0
        %247 = vmatpush1.msra.mxu0 0.0
        %248 = vmatprep.subr.mxu0 0.0
        %249 = vmatpush1.msra.mxu0 0.0
        %250 = vmatprep.subr.mxu0 0.0
        %251 = vmatpush1.msra.mxu0 0.0
        %252 = vmatprep.subr.mxu0 0.0
        %253 = vmatpush1.msra.mxu0 0.0
        %254 = vmatprep.subr.mxu0 0.0
        %255 = vmatpush1.msra.mxu0 0.0
        %256 = vmatprep.subr.mxu0 0.0
        %257 = vmatpush1.msra.mxu0 0.0
        %258 = vmatprep.subr.mxu0 0.0
        %259 = vmatpush1.msra.mxu0 0.0
        %260 = vmatprep.subr.mxu0 0.0
        %261 = vmatpush1.msra.mxu0 0.0
        %262 = vmatprep.subr.mxu0 0.0
        %263 = vmatpush1.msra.mxu0 0.0
        %264 = vmatprep.subr.mxu0 0.0
        %265 = vmatpush1.msra.mxu0 0.0
        %266 = vmatprep.subr.mxu0 0.0
        %267 = vmatpush1.msra.mxu0 0.0
        %268 = vmatprep.subr.mxu0 0.0
        %269 = vmatpush1.msra.mxu0 0.0
        %270 = vmatprep.subr.mxu0 0.0
        %271 = vmatpush1.msra.mxu0 0.0
        %272 = vmatprep.subr.mxu0 0.0
        %273 = vmatpush1.msra.mxu0 0.0
        %274 = vmatprep.subr.mxu0 0.0
        %v275 = vand.u32 %v202, 4294901760
        %276 = vmatpush1.msra.mxu0 %v275
        %277 = vmatprep.subr.mxu0 0.0
        %v278 = vand.u32 %v201, 4294901760
        %279 = vmatpush1.msra.mxu0 %v278
        %280 = vmatprep.subr.mxu0 0.0
        %281 = vmatpush2.msra.mxu0 0.0
        %282 = vmatprep.subr.mxu0 0.0
        %283 = vmatpush2.msra.mxu0 0.0
        %284 = vmatprep.subr.mxu0 0.0
        %285 = vmatpush2.msra.mxu0 0.0
        %286 = vmatprep.subr.mxu0 0.0
        %287 = vmatpush2.msra.mxu0 0.0
        %288 = vmatprep.subr.mxu0 0.0
        %289 = vmatpush2.msra.mxu0 0.0
        %290 = vmatprep.subr.mxu0 0.0
        %291 = vmatpush2.msra.mxu0 0.0
        %292 = vmatprep.subr.mxu0 0.0
        %293 = vmatpush2.msra.mxu0 0.0
        %294 = vmatprep.subr.mxu0 0.0
        %295 = vmatpush2.msra.mxu0 0.0
        %296 = vmatprep.subr.mxu0 0.0
        %297 = vmatpush2.msra.mxu0 0.0
        %298 = vmatprep.subr.mxu0 0.0
        %299 = vmatpush2.msra.mxu0 0.0
        %300 = vmatprep.subr.mxu0 0.0
        %301 = vmatpush2.msra.mxu0 0.0
        %302 = vmatprep.subr.mxu0 0.0
        %303 = vmatpush2.msra.mxu0 0.0
        %304 = vmatprep.subr.mxu0 0.0
        %305 = vmatpush2.msra.mxu0 0.0
        %306 = vmatprep.subr.mxu0 0.0
        %307 = vmatpush2.msra.mxu0 0.0
        %308 = vmatprep.subr.mxu0 0.0
        %309 = vmatpush2.msra.mxu0 0.0
        %310 = vmatprep.subr.mxu0 0.0
        %311 = vmatpush2.msra.mxu0 0.0
        %312 = vmatprep.mubr.f32.mxu0 0.0
        %v313 = vand.u32 %v235, 4294901760
        %v314 = vsub.f32 %v235, %v313
        %v315 = vand.u32 %v314, 4294901760
        %v316 = vsub.f32 %v314, %v315
        %v317 = vand.u32 %v316, 4294901760
        %318 = vmatmul.mubr.f32.gmra.mxu0 %v317
        %v319 = vpop.f32.mrf.mxu0
        %v320 = vadd.f32 0.0, %v319
        %v321 = vpop.f32.mrf.mxu0
        %322 = vmatprep.mubr.f32.mxu0 0.0
        %v323 = vand.u32 %v238, 4294901760
        %v324 = vsub.f32 %v238, %v323
        %v325 = vand.u32 %v324, 4294901760
        %v326 = vsub.f32 %v324, %v325
        %v327 = vand.u32 %v326, 4294901760
        %328 = vmatmul.mubr.f32.gmra.mxu0 %v327
        %v329 = vpop.f32.mrf.mxu0
        %v330 = vadd.f32 0.0, %v329
        %v331 = vpop.f32.mrf.mxu0
        %332 = vmatprep.mubr.f32.mxu0 0.0
        %v333 = vand.u32 %v241, 4294901760
        %v334 = vsub.f32 %v241, %v333
        %v335 = vand.u32 %v334, 4294901760
        %v336 = vsub.f32 %v334, %v335
        %v337 = vand.u32 %v336, 4294901760
        %338 = vmatmul.mubr.f32.gmra.mxu0 %v337
        %v339 = vpop.f32.mrf.mxu0
        %v340 = vadd.f32 0.0, %v339
        %v341 = vpop.f32.mrf.mxu0
        %342 = vmatprep.mubr.f32.mxu0 0.0
        %v343 = vand.u32 %v244, 4294901760
        %v344 = vsub.f32 %v244, %v343
        %v345 = vand.u32 %v344, 4294901760
        %v346 = vsub.f32 %v344, %v345
        %v347 = vand.u32 %v346, 4294901760
        %348 = vmatmul.mubr.f32.gmra.mxu0 %v347
        %v349 = vpop.f32.mrf.mxu0
        %v350 = vadd.f32 0.0, %v349
        %v351 = vpop.f32.mrf.mxu0
        %352 = vdwg.mxu0
        %353 = vmatprep.subr.mxu0 0.0
        %354 = vmatpush1.msra.mxu0 0.0
        %355 = vmatprep.subr.mxu0 0.0
        %356 = vmatpush1.msra.mxu0 0.0
        %357 = vmatprep.subr.mxu0 0.0
        %358 = vmatpush1.msra.mxu0 0.0
        %359 = vmatprep.subr.mxu0 0.0
        %360 = vmatpush1.msra.mxu0 0.0
        %361 = vmatprep.subr.mxu0 0.0
        %362 = vmatpush1.msra.mxu0 0.0
        %363 = vmatprep.subr.mxu0 0.0
        %364 = vmatpush1.msra.mxu0 0.0
        %365 = vmatprep.subr.mxu0 0.0
        %366 = vmatpush1.msra.mxu0 0.0
        %367 = vmatprep.subr.mxu0 0.0
        %368 = vmatpush1.msra.mxu0 0.0
        %369 = vmatprep.subr.mxu0 0.0
        %370 = vmatpush1.msra.mxu0 0.0
        %371 = vmatprep.subr.mxu0 0.0
        %372 = vmatpush1.msra.mxu0 0.0
        %373 = vmatprep.subr.mxu0 0.0
        %374 = vmatpush1.msra.mxu0 0.0
        %375 = vmatprep.subr.mxu0 0.0
        %376 = vmatpush1.msra.mxu0 0.0
        %377 = vmatprep.subr.mxu0 0.0
        %378 = vmatpush1.msra.mxu0 0.0
        %379 = vmatprep.subr.mxu0 0.0
        %380 = vmatpush1.msra.mxu0 0.0
        %381 = vmatprep.subr.mxu0 0.0
        %v382 = vand.u32 %v202, 4294901760
        %v383 = vsub.f32 %v202, %v382
        %v384 = vand.u32 %v383, 4294901760
        %v385 = vsub.f32 %v383, %v384
        %v386 = vand.u32 %v385, 4294901760
        %387 = vmatpush1.msra.mxu0 %v386
        %388 = vmatprep.subr.mxu0 0.0
        %v389 = vand.u32 %v201, 4294901760
        %v390 = vsub.f32 %v201, %v389
        %v391 = vand.u32 %v390, 4294901760
        %v392 = vsub.f32 %v390, %v391
        %v393 = vand.u32 %v392, 4294901760
        %394 = vmatpush1.msra.mxu0 %v393
        %395 = vmatprep.subr.mxu0 0.0
        %396 = vmatpush2.msra.mxu0 0.0
        %397 = vmatprep.subr.mxu0 0.0
        %398 = vmatpush2.msra.mxu0 0.0
        %399 = vmatprep.subr.mxu0 0.0
        %400 = vmatpush2.msra.mxu0 0.0
        %401 = vmatprep.subr.mxu0 0.0
        %402 = vmatpush2.msra.mxu0 0.0
        %403 = vmatprep.subr.mxu0 0.0
        %404 = vmatpush2.msra.mxu0 0.0
        %405 = vmatprep.subr.mxu0 0.0
        %406 = vmatpush2.msra.mxu0 0.0
        %407 = vmatprep.subr.mxu0 0.0
        %408 = vmatpush2.msra.mxu0 0.0
        %409 = vmatprep.subr.mxu0 0.0
        %410 = vmatpush2.msra.mxu0 0.0
        %411 = vmatprep.subr.mxu0 0.0
        %412 = vmatpush2.msra.mxu0 0.0
        %413 = vmatprep.subr.mxu0 0.0
        %414 = vmatpush2.msra.mxu0 0.0
        %415 = vmatprep.subr.mxu0 0.0
        %416 = vmatpush2.msra.mxu0 0.0
        %417 = vmatprep.subr.mxu0 0.0
        %418 = vmatpush2.msra.mxu0 0.0
        %419 = vmatprep.subr.mxu0 0.0
        %420 = vmatpush2.msra.mxu0 0.0
        %421 = vmatprep.subr.mxu0 0.0
        %422 = vmatpush2.msra.mxu0 0.0
        %423 = vmatprep.subr.mxu0 0.0
        %424 = vmatpush2.msra.mxu0 0.0
        %425 = vmatprep.subr.mxu0 0.0
        %426 = vmatpush2.msra.mxu0 0.0
        %427 = vmatprep.mubr.f32.mxu0 0.0
        %v428 = vand.u32 %v235, 4294901760
        %429 = vmatmul.mubr.f32.gmra.mxu0 %v428
        %v430 = vpop.f32.mrf.mxu0
        %v431 = vadd.f32 %v320, %v430
        %v432 = vpop.f32.mrf.mxu0
        %433 = vmatprep.mubr.f32.mxu0 0.0
        %v434 = vand.u32 %v238, 4294901760
        %435 = vmatmul.mubr.f32.gmra.mxu0 %v434
        %v436 = vpop.f32.mrf.mxu0
        %v437 = vadd.f32 %v330, %v436
        %v438 = vpop.f32.mrf.mxu0
        %439 = vmatprep.mubr.f32.mxu0 0.0
        %v440 = vand.u32 %v241, 4294901760
        %441 = vmatmul.mubr.f32.gmra.mxu0 %v440
        %v442 = vpop.f32.mrf.mxu0
        %v443 = vadd.f32 %v340, %v442
        %v444 = vpop.f32.mrf.mxu0
        %445 = vmatprep.mubr.f32.mxu0 0.0
        %v446 = vand.u32 %v244, 4294901760
        %447 = vmatmul.mubr.f32.gmra.mxu0 %v446
        %v448 = vpop.f32.mrf.mxu0
        %v449 = vadd.f32 %v350, %v448
        %v450 = vpop.f32.mrf.mxu0
        %451 = vdwg.mxu0
        %452 = vmatprep.subr.mxu0 0.0
        %453 = vmatpush1.msra.mxu0 0.0
        %454 = vmatprep.subr.mxu0 0.0
        %455 = vmatpush1.msra.mxu0 0.0
        %456 = vmatprep.subr.mxu0 0.0
        %457 = vmatpush1.msra.mxu0 0.0
        %458 = vmatprep.subr.mxu0 0.0
        %459 = vmatpush1.msra.mxu0 0.0
        %460 = vmatprep.subr.mxu0 0.0
        %461 = vmatpush1.msra.mxu0 0.0
        %462 = vmatprep.subr.mxu0 0.0
        %463 = vmatpush1.msra.mxu0 0.0
        %464 = vmatprep.subr.mxu0 0.0
        %465 = vmatpush1.msra.mxu0 0.0
        %466 = vmatprep.subr.mxu0 0.0
        %467 = vmatpush1.msra.mxu0 0.0
        %468 = vmatprep.subr.mxu0 0.0
        %469 = vmatpush1.msra.mxu0 0.0
        %470 = vmatprep.subr.mxu0 0.0
        %471 = vmatpush1.msra.mxu0 0.0
        %472 = vmatprep.subr.mxu0 0.0
        %473 = vmatpush1.msra.mxu0 0.0
        %474 = vmatprep.subr.mxu0 0.0
        %475 = vmatpush1.msra.mxu0 0.0
        %476 = vmatprep.subr.mxu0 0.0
        %477 = vmatpush1.msra.mxu0 0.0
        %478 = vmatprep.subr.mxu0 0.0
        %479 = vmatpush1.msra.mxu0 0.0
        %480 = vmatprep.subr.mxu0 0.0
        %v481 = vand.u32 %v202, 4294901760
        %v482 = vsub.f32 %v202, %v481
        %483 = vmatpush1.msra.mxu0 %v482
        %484 = vmatprep.subr.mxu0 0.0
        %v485 = vand.u32 %v201, 4294901760
        %v486 = vsub.f32 %v201, %v485
        %487 = vmatpush1.msra.mxu0 %v486
        %488 = vmatprep.subr.mxu0 0.0
        %489 = vmatpush2.msra.mxu0 0.0
        %490 = vmatprep.subr.mxu0 0.0
        %491 = vmatpush2.msra.mxu0 0.0
        %492 = vmatprep.subr.mxu0 0.0
        %493 = vmatpush2.msra.mxu0 0.0
        %494 = vmatprep.subr.mxu0 0.0
        %495 = vmatpush2.msra.mxu0 0.0
        %496 = vmatprep.subr.mxu0 0.0
        %497 = vmatpush2.msra.mxu0 0.0
        %498 = vmatprep.subr.mxu0 0.0
        %499 = vmatpush2.msra.mxu0 0.0
        %500 = vmatprep.subr.mxu0 0.0
        %501 = vmatpush2.msra.mxu0 0.0
        %502 = vmatprep.subr.mxu0 0.0
        %503 = vmatpush2.msra.mxu0 0.0
        %504 = vmatprep.subr.mxu0 0.0
        %505 = vmatpush2.msra.mxu0 0.0
        %506 = vmatprep.subr.mxu0 0.0
        %507 = vmatpush2.msra.mxu0 0.0
        %508 = vmatprep.subr.mxu0 0.0
        %509 = vmatpush2.msra.mxu0 0.0
        %510 = vmatprep.subr.mxu0 0.0
        %511 = vmatpush2.msra.mxu0 0.0
        %512 = vmatprep.subr.mxu0 0.0
        %513 = vmatpush2.msra.mxu0 0.0
        %514 = vmatprep.subr.mxu0 0.0
        %515 = vmatpush2.msra.mxu0 0.0
        %516 = vmatprep.subr.mxu0 0.0
        %517 = vmatpush2.msra.mxu0 0.0
        %518 = vmatprep.subr.mxu0 0.0
        %519 = vmatpush2.msra.mxu0 0.0
        %520 = vmatprep.mubr.f32.mxu0 0.0
        %v521 = vand.u32 %v235, 4294901760
        %v522 = vsub.f32 %v235, %v521
        %523 = vmatmul.mubr.f32.gmra.mxu0 %v522
        %v524 = vpop.f32.mrf.mxu0
        %v525 = vadd.f32 %v431, %v524
        %v526 = vpop.f32.mrf.mxu0
        %527 = vmatprep.mubr.f32.mxu0 0.0
        %v528 = vand.u32 %v238, 4294901760
        %v529 = vsub.f32 %v238, %v528
        %530 = vmatmul.mubr.f32.gmra.mxu0 %v529
        %v531 = vpop.f32.mrf.mxu0
        %v532 = vadd.f32 %v437, %v531
        %v533 = vpop.f32.mrf.mxu0
        %534 = vmatprep.mubr.f32.mxu0 0.0
        %v535 = vand.u32 %v241, 4294901760
        %v536 = vsub.f32 %v241, %v535
        %537 = vmatmul.mubr.f32.gmra.mxu0 %v536
        %v538 = vpop.f32.mrf.mxu0
        %v539 = vadd.f32 %v443, %v538
        %v540 = vpop.f32.mrf.mxu0
        %541 = vmatprep.mubr.f32.mxu0 0.0
        %v542 = vand.u32 %v244, 4294901760
        %v543 = vsub.f32 %v244, %v542
        %544 = vmatmul.mubr.f32.gmra.mxu0 %v543
        %v545 = vpop.f32.mrf.mxu0
        %v546 = vadd.f32 %v449, %v545
        %v547 = vpop.f32.mrf.mxu0
        %548 = vdwg.mxu0
        %549 = vmatprep.subr.mxu0 0.0
        %550 = vmatpush1.msra.mxu0 0.0
        %551 = vmatprep.subr.mxu0 0.0
        %552 = vmatpush1.msra.mxu0 0.0
        %553 = vmatprep.subr.mxu0 0.0
        %554 = vmatpush1.msra.mxu0 0.0
        %555 = vmatprep.subr.mxu0 0.0
        %556 = vmatpush1.msra.mxu0 0.0
        %557 = vmatprep.subr.mxu0 0.0
        %558 = vmatpush1.msra.mxu0 0.0
        %559 = vmatprep.subr.mxu0 0.0
        %560 = vmatpush1.msra.mxu0 0.0
        %561 = vmatprep.subr.mxu0 0.0
        %562 = vmatpush1.msra.mxu0 0.0
        %563 = vmatprep.subr.mxu0 0.0
        %564 = vmatpush1.msra.mxu0 0.0
        %565 = vmatprep.subr.mxu0 0.0
        %566 = vmatpush1.msra.mxu0 0.0
        %567 = vmatprep.subr.mxu0 0.0
        %568 = vmatpush1.msra.mxu0 0.0
        %569 = vmatprep.subr.mxu0 0.0
        %570 = vmatpush1.msra.mxu0 0.0
        %571 = vmatprep.subr.mxu0 0.0
        %572 = vmatpush1.msra.mxu0 0.0
        %573 = vmatprep.subr.mxu0 0.0
        %574 = vmatpush1.msra.mxu0 0.0
        %575 = vmatprep.subr.mxu0 0.0
        %576 = vmatpush1.msra.mxu0 0.0
        %577 = vmatprep.subr.mxu0 0.0
        %v578 = vand.u32 %v202, 4294901760
        %579 = vmatpush1.msra.mxu0 %v578
        %580 = vmatprep.subr.mxu0 0.0
        %v581 = vand.u32 %v201, 4294901760
        %582 = vmatpush1.msra.mxu0 %v581
        %583 = vmatprep.subr.mxu0 0.0
        %584 = vmatpush2.msra.mxu0 0.0
        %585 = vmatprep.subr.mxu0 0.0
        %586 = vmatpush2.msra.mxu0 0.0
        %587 = vmatprep.subr.mxu0 0.0
        %588 = vmatpush2.msra.mxu0 0.0
        %589 = vmatprep.subr.mxu0 0.0
        %590 = vmatpush2.msra.mxu0 0.0
        %591 = vmatprep.subr.mxu0 0.0
        %592 = vmatpush2.msra.mxu0 0.0
        %593 = vmatprep.subr.mxu0 0.0
        %594 = vmatpush2.msra.mxu0 0.0
        %595 = vmatprep.subr.mxu0 0.0
        %596 = vmatpush2.msra.mxu0 0.0
        %597 = vmatprep.subr.mxu0 0.0
        %598 = vmatpush2.msra.mxu0 0.0
        %599 = vmatprep.subr.mxu0 0.0
        %600 = vmatpush2.msra.mxu0 0.0
        %601 = vmatprep.subr.mxu0 0.0
        %602 = vmatpush2.msra.mxu0 0.0
        %603 = vmatprep.subr.mxu0 0.0
        %604 = vmatpush2.msra.mxu0 0.0
        %605 = vmatprep.subr.mxu0 0.0
        %606 = vmatpush2.msra.mxu0 0.0
        %607 = vmatprep.subr.mxu0 0.0
        %608 = vmatpush2.msra.mxu0 0.0
        %609 = vmatprep.subr.mxu0 0.0
        %610 = vmatpush2.msra.mxu0 0.0
        %611 = vmatprep.subr.mxu0 0.0
        %612 = vmatpush2.msra.mxu0 0.0
        %613 = vmatprep.subr.mxu0 0.0
        %614 = vmatpush2.msra.mxu0 0.0
        %615 = vmatprep.mubr.f32.mxu0 0.0
        %v616 = vand.u32 %v235, 4294901760
        %v617 = vsub.f32 %v235, %v616
        %v618 = vand.u32 %v617, 4294901760
        %619 = vmatmul.mubr.f32.gmra.mxu0 %v618
        %v620 = vpop.f32.mrf.mxu0
        %v621 = vadd.f32 %v525, %v620
        %v622 = vpop.f32.mrf.mxu0
        %623 = vmatprep.mubr.f32.mxu0 0.0
        %v624 = vand.u32 %v238, 4294901760
        %v625 = vsub.f32 %v238, %v624
        %v626 = vand.u32 %v625, 4294901760
        %627 = vmatmul.mubr.f32.gmra.mxu0 %v626
        %v628 = vpop.f32.mrf.mxu0
        %v629 = vadd.f32 %v532, %v628
        %v630 = vpop.f32.mrf.mxu0
        %631 = vmatprep.mubr.f32.mxu0 0.0
        %v632 = vand.u32 %v241, 4294901760
        %v633 = vsub.f32 %v241, %v632
        %v634 = vand.u32 %v633, 4294901760
        %635 = vmatmul.mubr.f32.gmra.mxu0 %v634
        %v636 = vpop.f32.mrf.mxu0
        %v637 = vadd.f32 %v539, %v636
        %v638 = vpop.f32.mrf.mxu0
        %639 = vmatprep.mubr.f32.mxu0 0.0
        %v640 = vand.u32 %v244, 4294901760
        %v641 = vsub.f32 %v244, %v640
        %v642 = vand.u32 %v641, 4294901760
        %643 = vmatmul.mubr.f32.gmra.mxu0 %v642
        %v644 = vpop.f32.mrf.mxu0
        %v645 = vadd.f32 %v546, %v644
        %v646 = vpop.f32.mrf.mxu0
        %647 = vdwg.mxu0
        %648 = vmatprep.subr.mxu0 0.0
        %649 = vmatpush1.msra.mxu0 0.0
        %650 = vmatprep.subr.mxu0 0.0
        %651 = vmatpush1.msra.mxu0 0.0
        %652 = vmatprep.subr.mxu0 0.0
        %653 = vmatpush1.msra.mxu0 0.0
        %654 = vmatprep.subr.mxu0 0.0
        %655 = vmatpush1.msra.mxu0 0.0
        %656 = vmatprep.subr.mxu0 0.0
        %657 = vmatpush1.msra.mxu0 0.0
        %658 = vmatprep.subr.mxu0 0.0
        %659 = vmatpush1.msra.mxu0 0.0
        %660 = vmatprep.subr.mxu0 0.0
        %661 = vmatpush1.msra.mxu0 0.0
        %662 = vmatprep.subr.mxu0 0.0
        %663 = vmatpush1.msra.mxu0 0.0
        %664 = vmatprep.subr.mxu0 0.0
        %665 = vmatpush1.msra.mxu0 0.0
        %666 = vmatprep.subr.mxu0 0.0
        %667 = vmatpush1.msra.mxu0 0.0
        %668 = vmatprep.subr.mxu0 0.0
        %669 = vmatpush1.msra.mxu0 0.0
        %670 = vmatprep.subr.mxu0 0.0
        %671 = vmatpush1.msra.mxu0 0.0
        %672 = vmatprep.subr.mxu0 0.0
        %673 = vmatpush1.msra.mxu0 0.0
        %674 = vmatprep.subr.mxu0 0.0
        %675 = vmatpush1.msra.mxu0 0.0
        %676 = vmatprep.subr.mxu0 0.0
        %v677 = vand.u32 %v202, 4294901760
        %v678 = vsub.f32 %v202, %v677
        %v679 = vand.u32 %v678, 4294901760
        %680 = vmatpush1.msra.mxu0 %v679
        %681 = vmatprep.subr.mxu0 0.0
        %v682 = vand.u32 %v201, 4294901760
        %v683 = vsub.f32 %v201, %v682
        %v684 = vand.u32 %v683, 4294901760
        %685 = vmatpush1.msra.mxu0 %v684
        %686 = vmatprep.subr.mxu0 0.0
        %687 = vmatpush2.msra.mxu0 0.0
        %688 = vmatprep.subr.mxu0 0.0
        %689 = vmatpush2.msra.mxu0 0.0
        %690 = vmatprep.subr.mxu0 0.0
        %691 = vmatpush2.msra.mxu0 0.0
        %692 = vmatprep.subr.mxu0 0.0
        %693 = vmatpush2.msra.mxu0 0.0
        %694 = vmatprep.subr.mxu0 0.0
        %695 = vmatpush2.msra.mxu0 0.0
        %696 = vmatprep.subr.mxu0 0.0
        %697 = vmatpush2.msra.mxu0 0.0
        %698 = vmatprep.subr.mxu0 0.0
        %699 = vmatpush2.msra.mxu0 0.0
        %700 = vmatprep.subr.mxu0 0.0
        %701 = vmatpush2.msra.mxu0 0.0
        %702 = vmatprep.subr.mxu0 0.0
        %703 = vmatpush2.msra.mxu0 0.0
        %704 = vmatprep.subr.mxu0 0.0
        %705 = vmatpush2.msra.mxu0 0.0
        %706 = vmatprep.subr.mxu0 0.0
        %707 = vmatpush2.msra.mxu0 0.0
        %708 = vmatprep.subr.mxu0 0.0
        %709 = vmatpush2.msra.mxu0 0.0
        %710 = vmatprep.subr.mxu0 0.0
        %711 = vmatpush2.msra.mxu0 0.0
        %712 = vmatprep.subr.mxu0 0.0
        %713 = vmatpush2.msra.mxu0 0.0
        %714 = vmatprep.subr.mxu0 0.0
        %715 = vmatpush2.msra.mxu0 0.0
        %716 = vmatprep.subr.mxu0 0.0
        %717 = vmatpush2.msra.mxu0 0.0
        %718 = vmatprep.mubr.f32.mxu0 0.0
        %v719 = vand.u32 %v235, 4294901760
        %720 = vmatmul.mubr.f32.gmra.mxu0 %v719
        %v721 = vpop.f32.mrf.mxu0
        %v722 = vadd.f32 %v621, %v721
        %v723 = vpop.f32.mrf.mxu0
        %724 = vmatprep.mubr.f32.mxu0 0.0
        %v725 = vand.u32 %v238, 4294901760
        %726 = vmatmul.mubr.f32.gmra.mxu0 %v725
        %v727 = vpop.f32.mrf.mxu0
        %v728 = vadd.f32 %v629, %v727
        %v729 = vpop.f32.mrf.mxu0
        %730 = vmatprep.mubr.f32.mxu0 0.0
        %v731 = vand.u32 %v241, 4294901760
        %732 = vmatmul.mubr.f32.gmra.mxu0 %v731
        %v733 = vpop.f32.mrf.mxu0
        %v734 = vadd.f32 %v637, %v733
        %v735 = vpop.f32.mrf.mxu0
        %736 = vmatprep.mubr.f32.mxu0 0.0
        %v737 = vand.u32 %v244, 4294901760
        %738 = vmatmul.mubr.f32.gmra.mxu0 %v737
        %v739 = vpop.f32.mrf.mxu0
        %v740 = vadd.f32 %v645, %v739
        %v741 = vpop.f32.mrf.mxu0
        %742 = vdwg.mxu0
        %743 = vmatprep.subr.mxu0 0.0
        %744 = vmatpush1.msra.mxu0 0.0
        %745 = vmatprep.subr.mxu0 0.0
        %746 = vmatpush1.msra.mxu0 0.0
        %747 = vmatprep.subr.mxu0 0.0
        %748 = vmatpush1.msra.mxu0 0.0
        %749 = vmatprep.subr.mxu0 0.0
        %750 = vmatpush1.msra.mxu0 0.0
        %751 = vmatprep.subr.mxu0 0.0
        %752 = vmatpush1.msra.mxu0 0.0
        %753 = vmatprep.subr.mxu0 0.0
        %754 = vmatpush1.msra.mxu0 0.0
        %755 = vmatprep.subr.mxu0 0.0
        %756 = vmatpush1.msra.mxu0 0.0
        %757 = vmatprep.subr.mxu0 0.0
        %758 = vmatpush1.msra.mxu0 0.0
        %759 = vmatprep.subr.mxu0 0.0
        %760 = vmatpush1.msra.mxu0 0.0
        %761 = vmatprep.subr.mxu0 0.0
        %762 = vmatpush1.msra.mxu0 0.0
        %763 = vmatprep.subr.mxu0 0.0
        %764 = vmatpush1.msra.mxu0 0.0
        %765 = vmatprep.subr.mxu0 0.0
        %766 = vmatpush1.msra.mxu0 0.0
        %767 = vmatprep.subr.mxu0 0.0
        %768 = vmatpush1.msra.mxu0 0.0
        %769 = vmatprep.subr.mxu0 0.0
        %770 = vmatpush1.msra.mxu0 0.0
        %771 = vmatprep.subr.mxu0 0.0
        %v772 = vand.u32 %v202, 4294901760
        %773 = vmatpush1.msra.mxu0 %v772
        %774 = vmatprep.subr.mxu0 0.0
        %v775 = vand.u32 %v201, 4294901760
        %776 = vmatpush1.msra.mxu0 %v775
        %777 = vmatprep.subr.mxu0 0.0
        %778 = vmatpush2.msra.mxu0 0.0
        %779 = vmatprep.subr.mxu0 0.0
        %780 = vmatpush2.msra.mxu0 0.0
        %781 = vmatprep.subr.mxu0 0.0
        %782 = vmatpush2.msra.mxu0 0.0
        %783 = vmatprep.subr.mxu0 0.0
        %784 = vmatpush2.msra.mxu0 0.0
        %785 = vmatprep.subr.mxu0 0.0
        %786 = vmatpush2.msra.mxu0 0.0
        %787 = vmatprep.subr.mxu0 0.0
        %788 = vmatpush2.msra.mxu0 0.0
        %789 = vmatprep.subr.mxu0 0.0
        %790 = vmatpush2.msra.mxu0 0.0
        %791 = vmatprep.subr.mxu0 0.0
        %792 = vmatpush2.msra.mxu0 0.0
        %793 = vmatprep.subr.mxu0 0.0
        %794 = vmatpush2.msra.mxu0 0.0
        %795 = vmatprep.subr.mxu0 0.0
        %796 = vmatpush2.msra.mxu0 0.0
        %797 = vmatprep.subr.mxu0 0.0
        %798 = vmatpush2.msra.mxu0 0.0
        %799 = vmatprep.subr.mxu0 0.0
        %800 = vmatpush2.msra.mxu0 0.0
        %801 = vmatprep.subr.mxu0 0.0
        %802 = vmatpush2.msra.mxu0 0.0
        %803 = vmatprep.subr.mxu0 0.0
        %804 = vmatpush2.msra.mxu0 0.0
        %805 = vmatprep.subr.mxu0 0.0
        %806 = vmatpush2.msra.mxu0 0.0
        %807 = vmatprep.subr.mxu0 0.0
        %808 = vmatpush2.msra.mxu0 0.0
        %809 = vmatprep.mubr.f32.mxu0 0.0
        %v810 = vand.u32 %v235, 4294901760
        %811 = vmatmul.mubr.f32.gmra.mxu0 %v810
        %v812 = vpop.f32.mrf.mxu0
        %v813 = vadd.f32 %v722, %v812
        %v814 = vpop.f32.mrf.mxu0
        %815 = vmatprep.mubr.f32.mxu0 0.0
        %v816 = vand.u32 %v238, 4294901760
        %817 = vmatmul.mubr.f32.gmra.mxu0 %v816
        %v818 = vpop.f32.mrf.mxu0
        %v819 = vadd.f32 %v728, %v818
        %v820 = vpop.f32.mrf.mxu0
        %821 = vmatprep.mubr.f32.mxu0 0.0
        %v822 = vand.u32 %v241, 4294901760
        %823 = vmatmul.mubr.f32.gmra.mxu0 %v822
        %v824 = vpop.f32.mrf.mxu0
        %v825 = vadd.f32 %v734, %v824
        %v826 = vpop.f32.mrf.mxu0
        %827 = vmatprep.mubr.f32.mxu0 0.0
        %v828 = vand.u32 %v244, 4294901760
        %829 = vmatmul.mubr.f32.gmra.mxu0 %v828
        %v830 = vpop.f32.mrf.mxu0
        %v831 = vadd.f32 %v740, %v830
        %v832 = vpop.f32.mrf.mxu0
        %833 = vdwg.mxu0
        %834 = vst.msk [vmem:[%s183] sm:$0xff] %vm233, %v813
        %835 = vst.msk [vmem:[%s183 + $0x10] sm:$0xff] %vm233, %v819
        %836 = vst.msk [vmem:[%s183 + $0x20] sm:$0xff] %vm233, %v825
        %837 = vst.msk [vmem:[%s183 + $0x30] sm:$0xff] %vm233, %v831
        %s838 = scalar_lea.vmem %s197, 64
        %v839 = vld [vmem:[%s838] sm:$0xff]
        %v840 = vld [vmem:[%s838 + $0x8] sm:$0xff]
        %v841 = vld [vmem:[%s838 + $0x10] sm:$0xff]
        %v842 = vld [vmem:[%s838 + $0x18] sm:$0xff]
        %s843 = scalar_lea.vmem %s197, 96
        %v844 = vld [vmem:[%s843] sm:$0xff]
        %v845 = vld [vmem:[%s843 + $0x8] sm:$0xff]
        %v846 = vld [vmem:[%s843 + $0x10] sm:$0xff]
        %v847 = vld [vmem:[%s843 + $0x18] sm:$0xff]
        %852 = vrot.lane.b32.xlu0 %v844, 8
        %v853 = vpop.permute.xlu0 %852
        %854 = vrot.lane.b32.xlu0 %v845, 8
        %v855 = vpop.permute.xlu0 %854
        %856 = vrot.lane.b32.xlu0 %v846, 8
        %v857 = vpop.permute.xlu0 %856
        %858 = vrot.lane.b32.xlu0 %v847, 8
        %v859 = vpop.permute.xlu0 %858
        %v864 = vsel %vm228, %v839, %v853
        %v865 = vsel %vm228, %v840, %v855
        %v866 = vsel %vm228, %v841, %v857
        %v867 = vsel %vm228, %v842, %v859
        %v869 = vsel %vm233, %v864, 0
        %v872 = vsel %vm233, %v865, 0
        %v875 = vsel %vm233, %v866, 0
        %v878 = vsel %vm233, %v867, 0
        %880 = vmatprep.subr.mxu0 0.0
        %881 = vmatpush1.msra.mxu0 0.0
        %882 = vmatprep.subr.mxu0 0.0
        %883 = vmatpush1.msra.mxu0 0.0
        %884 = vmatprep.subr.mxu0 0.0
        %885 = vmatpush1.msra.mxu0 0.0
        %886 = vmatprep.subr.mxu0 0.0
        %887 = vmatpush1.msra.mxu0 0.0
        %888 = vmatprep.subr.mxu0 0.0
        %889 = vmatpush1.msra.mxu0 0.0
        %890 = vmatprep.subr.mxu0 0.0
        %891 = vmatpush1.msra.mxu0 0.0
        %892 = vmatprep.subr.mxu0 0.0
        %893 = vmatpush1.msra.mxu0 0.0
        %894 = vmatprep.subr.mxu0 0.0
        %895 = vmatpush1.msra.mxu0 0.0
        %896 = vmatprep.subr.mxu0 0.0
        %897 = vmatpush1.msra.mxu0 0.0
        %898 = vmatprep.subr.mxu0 0.0
        %899 = vmatpush1.msra.mxu0 0.0
        %900 = vmatprep.subr.mxu0 0.0
        %901 = vmatpush1.msra.mxu0 0.0
        %902 = vmatprep.subr.mxu0 0.0
        %903 = vmatpush1.msra.mxu0 0.0
        %904 = vmatprep.subr.mxu0 0.0
        %905 = vmatpush1.msra.mxu0 0.0
        %906 = vmatprep.subr.mxu0 0.0
        %907 = vmatpush1.msra.mxu0 0.0
        %908 = vmatprep.subr.mxu0 0.0
        %v909 = vand.u32 %v202, 4294901760
        %910 = vmatpush1.msra.mxu0 %v909
        %911 = vmatprep.subr.mxu0 0.0
        %v912 = vand.u32 %v201, 4294901760
        %913 = vmatpush1.msra.mxu0 %v912
        %914 = vmatprep.subr.mxu0 0.0
        %915 = vmatpush2.msra.mxu0 0.0
        %916 = vmatprep.subr.mxu0 0.0
        %917 = vmatpush2.msra.mxu0 0.0
        %918 = vmatprep.subr.mxu0 0.0
        %919 = vmatpush2.msra.mxu0 0.0
        %920 = vmatprep.subr.mxu0 0.0
        %921 = vmatpush2.msra.mxu0 0.0
        %922 = vmatprep.subr.mxu0 0.0
        %923 = vmatpush2.msra.mxu0 0.0
        %924 = vmatprep.subr.mxu0 0.0
        %925 = vmatpush2.msra.mxu0 0.0
        %926 = vmatprep.subr.mxu0 0.0
        %927 = vmatpush2.msra.mxu0 0.0
        %928 = vmatprep.subr.mxu0 0.0
        %929 = vmatpush2.msra.mxu0 0.0
        %930 = vmatprep.subr.mxu0 0.0
        %931 = vmatpush2.msra.mxu0 0.0
        %932 = vmatprep.subr.mxu0 0.0
        %933 = vmatpush2.msra.mxu0 0.0
        %934 = vmatprep.subr.mxu0 0.0
        %935 = vmatpush2.msra.mxu0 0.0
        %936 = vmatprep.subr.mxu0 0.0
        %937 = vmatpush2.msra.mxu0 0.0
        %938 = vmatprep.subr.mxu0 0.0
        %939 = vmatpush2.msra.mxu0 0.0
        %940 = vmatprep.subr.mxu0 0.0
        %941 = vmatpush2.msra.mxu0 0.0
        %942 = vmatprep.subr.mxu0 0.0
        %943 = vmatpush2.msra.mxu0 0.0
        %944 = vmatprep.subr.mxu0 0.0
        %945 = vmatpush2.msra.mxu0 0.0
        %946 = vmatprep.mubr.f32.mxu0 0.0
        %v947 = vand.u32 %v869, 4294901760
        %v948 = vsub.f32 %v869, %v947
        %v949 = vand.u32 %v948, 4294901760
        %v950 = vsub.f32 %v948, %v949
        %v951 = vand.u32 %v950, 4294901760
        %952 = vmatmul.mubr.f32.gmra.mxu0 %v951
        %v953 = vpop.f32.mrf.mxu0
        %v954 = vadd.f32 0.0, %v953
        %v955 = vpop.f32.mrf.mxu0
        %956 = vmatprep.mubr.f32.mxu0 0.0
        %v957 = vand.u32 %v872, 4294901760
        %v958 = vsub.f32 %v872, %v957
        %v959 = vand.u32 %v958, 4294901760
        %v960 = vsub.f32 %v958, %v959
        %v961 = vand.u32 %v960, 4294901760
        %962 = vmatmul.mubr.f32.gmra.mxu0 %v961
        %v963 = vpop.f32.mrf.mxu0
        %v964 = vadd.f32 0.0, %v963
        %v965 = vpop.f32.mrf.mxu0
        %966 = vmatprep.mubr.f32.mxu0 0.0
        %v967 = vand.u32 %v875, 4294901760
        %v968 = vsub.f32 %v875, %v967
        %v969 = vand.u32 %v968, 4294901760
        %v970 = vsub.f32 %v968, %v969
        %v971 = vand.u32 %v970, 4294901760
        %972 = vmatmul.mubr.f32.gmra.mxu0 %v971
        %v973 = vpop.f32.mrf.mxu0
        %v974 = vadd.f32 0.0, %v973
        %v975 = vpop.f32.mrf.mxu0
        %976 = vmatprep.mubr.f32.mxu0 0.0
        %v977 = vand.u32 %v878, 4294901760
        %v978 = vsub.f32 %v878, %v977
        %v979 = vand.u32 %v978, 4294901760
        %v980 = vsub.f32 %v978, %v979
        %v981 = vand.u32 %v980, 4294901760
        %982 = vmatmul.mubr.f32.gmra.mxu0 %v981
        %v983 = vpop.f32.mrf.mxu0
        %v984 = vadd.f32 0.0, %v983
        %v985 = vpop.f32.mrf.mxu0
        %986 = vdwg.mxu0
        %987 = vmatprep.subr.mxu0 0.0
        %988 = vmatpush1.msra.mxu0 0.0
        %989 = vmatprep.subr.mxu0 0.0
        %990 = vmatpush1.msra.mxu0 0.0
        %991 = vmatprep.subr.mxu0 0.0
        %992 = vmatpush1.msra.mxu0 0.0
        %993 = vmatprep.subr.mxu0 0.0
        %994 = vmatpush1.msra.mxu0 0.0
        %995 = vmatprep.subr.mxu0 0.0
        %996 = vmatpush1.msra.mxu0 0.0
        %997 = vmatprep.subr.mxu0 0.0
        %998 = vmatpush1.msra.mxu0 0.0
        %999 = vmatprep.subr.mxu0 0.0
        %1000 = vmatpush1.msra.mxu0 0.0
        %1001 = vmatprep.subr.mxu0 0.0
        %1002 = vmatpush1.msra.mxu0 0.0
        %1003 = vmatprep.subr.mxu0 0.0
        %1004 = vmatpush1.msra.mxu0 0.0
        %1005 = vmatprep.subr.mxu0 0.0
        %1006 = vmatpush1.msra.mxu0 0.0
        %1007 = vmatprep.subr.mxu0 0.0
        %1008 = vmatpush1.msra.mxu0 0.0
        %1009 = vmatprep.subr.mxu0 0.0
        %1010 = vmatpush1.msra.mxu0 0.0
        %1011 = vmatprep.subr.mxu0 0.0
        %1012 = vmatpush1.msra.mxu0 0.0
        %1013 = vmatprep.subr.mxu0 0.0
        %1014 = vmatpush1.msra.mxu0 0.0
        %1015 = vmatprep.subr.mxu0 0.0
        %v1016 = vand.u32 %v202, 4294901760
        %v1017 = vsub.f32 %v202, %v1016
        %v1018 = vand.u32 %v1017, 4294901760
        %v1019 = vsub.f32 %v1017, %v1018
        %v1020 = vand.u32 %v1019, 4294901760
        %1021 = vmatpush1.msra.mxu0 %v1020
        %1022 = vmatprep.subr.mxu0 0.0
        %v1023 = vand.u32 %v201, 4294901760
        %v1024 = vsub.f32 %v201, %v1023
        %v1025 = vand.u32 %v1024, 4294901760
        %v1026 = vsub.f32 %v1024, %v1025
        %v1027 = vand.u32 %v1026, 4294901760
        %1028 = vmatpush1.msra.mxu0 %v1027
        %1029 = vmatprep.subr.mxu0 0.0
        %1030 = vmatpush2.msra.mxu0 0.0
        %1031 = vmatprep.subr.mxu0 0.0
        %1032 = vmatpush2.msra.mxu0 0.0
        %1033 = vmatprep.subr.mxu0 0.0
        %1034 = vmatpush2.msra.mxu0 0.0
        %1035 = vmatprep.subr.mxu0 0.0
        %1036 = vmatpush2.msra.mxu0 0.0
        %1037 = vmatprep.subr.mxu0 0.0
        %1038 = vmatpush2.msra.mxu0 0.0
        %1039 = vmatprep.subr.mxu0 0.0
        %1040 = vmatpush2.msra.mxu0 0.0
        %1041 = vmatprep.subr.mxu0 0.0
        %1042 = vmatpush2.msra.mxu0 0.0
        %1043 = vmatprep.subr.mxu0 0.0
        %1044 = vmatpush2.msra.mxu0 0.0
        %1045 = vmatprep.subr.mxu0 0.0
        %1046 = vmatpush2.msra.mxu0 0.0
        %1047 = vmatprep.subr.mxu0 0.0
        %1048 = vmatpush2.msra.mxu0 0.0
        %1049 = vmatprep.subr.mxu0 0.0
        %1050 = vmatpush2.msra.mxu0 0.0
        %1051 = vmatprep.subr.mxu0 0.0
        %1052 = vmatpush2.msra.mxu0 0.0
        %1053 = vmatprep.subr.mxu0 0.0
        %1054 = vmatpush2.msra.mxu0 0.0
        %1055 = vmatprep.subr.mxu0 0.0
        %1056 = vmatpush2.msra.mxu0 0.0
        %1057 = vmatprep.subr.mxu0 0.0
        %1058 = vmatpush2.msra.mxu0 0.0
        %1059 = vmatprep.subr.mxu0 0.0
        %1060 = vmatpush2.msra.mxu0 0.0
        %1061 = vmatprep.mubr.f32.mxu0 0.0
        %v1062 = vand.u32 %v869, 4294901760
        %1063 = vmatmul.mubr.f32.gmra.mxu0 %v1062
        %v1064 = vpop.f32.mrf.mxu0
        %v1065 = vadd.f32 %v954, %v1064
        %v1066 = vpop.f32.mrf.mxu0
        %1067 = vmatprep.mubr.f32.mxu0 0.0
        %v1068 = vand.u32 %v872, 4294901760
        %1069 = vmatmul.mubr.f32.gmra.mxu0 %v1068
        %v1070 = vpop.f32.mrf.mxu0
        %v1071 = vadd.f32 %v964, %v1070
        %v1072 = vpop.f32.mrf.mxu0
        %1073 = vmatprep.mubr.f32.mxu0 0.0
        %v1074 = vand.u32 %v875, 4294901760
        %1075 = vmatmul.mubr.f32.gmra.mxu0 %v1074
        %v1076 = vpop.f32.mrf.mxu0
        %v1077 = vadd.f32 %v974, %v1076
        %v1078 = vpop.f32.mrf.mxu0
        %1079 = vmatprep.mubr.f32.mxu0 0.0
        %v1080 = vand.u32 %v878, 4294901760
        %1081 = vmatmul.mubr.f32.gmra.mxu0 %v1080
        %v1082 = vpop.f32.mrf.mxu0
        %v1083 = vadd.f32 %v984, %v1082
        %v1084 = vpop.f32.mrf.mxu0
        %1085 = vdwg.mxu0
        %1086 = vmatprep.subr.mxu0 0.0
        %1087 = vmatpush1.msra.mxu0 0.0
        %1088 = vmatprep.subr.mxu0 0.0
        %1089 = vmatpush1.msra.mxu0 0.0
        %1090 = vmatprep.subr.mxu0 0.0
        %1091 = vmatpush1.msra.mxu0 0.0
        %1092 = vmatprep.subr.mxu0 0.0
        %1093 = vmatpush1.msra.mxu0 0.0
        %1094 = vmatprep.subr.mxu0 0.0
        %1095 = vmatpush1.msra.mxu0 0.0
        %1096 = vmatprep.subr.mxu0 0.0
        %1097 = vmatpush1.msra.mxu0 0.0
        %1098 = vmatprep.subr.mxu0 0.0
        %1099 = vmatpush1.msra.mxu0 0.0
        %1100 = vmatprep.subr.mxu0 0.0
        %1101 = vmatpush1.msra.mxu0 0.0
        %1102 = vmatprep.subr.mxu0 0.0
        %1103 = vmatpush1.msra.mxu0 0.0
        %1104 = vmatprep.subr.mxu0 0.0
        %1105 = vmatpush1.msra.mxu0 0.0
        %1106 = vmatprep.subr.mxu0 0.0
        %1107 = vmatpush1.msra.mxu0 0.0
        %1108 = vmatprep.subr.mxu0 0.0
        %1109 = vmatpush1.msra.mxu0 0.0
        %1110 = vmatprep.subr.mxu0 0.0
        %1111 = vmatpush1.msra.mxu0 0.0
        %1112 = vmatprep.subr.mxu0 0.0
        %1113 = vmatpush1.msra.mxu0 0.0
        %1114 = vmatprep.subr.mxu0 0.0
        %v1115 = vand.u32 %v202, 4294901760
        %v1116 = vsub.f32 %v202, %v1115
        %1117 = vmatpush1.msra.mxu0 %v1116
        %1118 = vmatprep.subr.mxu0 0.0
        %v1119 = vand.u32 %v201, 4294901760
        %v1120 = vsub.f32 %v201, %v1119
        %1121 = vmatpush1.msra.mxu0 %v1120
        %1122 = vmatprep.subr.mxu0 0.0
        %1123 = vmatpush2.msra.mxu0 0.0
        %1124 = vmatprep.subr.mxu0 0.0
        %1125 = vmatpush2.msra.mxu0 0.0
        %1126 = vmatprep.subr.mxu0 0.0
        %1127 = vmatpush2.msra.mxu0 0.0
        %1128 = vmatprep.subr.mxu0 0.0
        %1129 = vmatpush2.msra.mxu0 0.0
        %1130 = vmatprep.subr.mxu0 0.0
        %1131 = vmatpush2.msra.mxu0 0.0
        %1132 = vmatprep.subr.mxu0 0.0
        %1133 = vmatpush2.msra.mxu0 0.0
        %1134 = vmatprep.subr.mxu0 0.0
        %1135 = vmatpush2.msra.mxu0 0.0
        %1136 = vmatprep.subr.mxu0 0.0
        %1137 = vmatpush2.msra.mxu0 0.0
        %1138 = vmatprep.subr.mxu0 0.0
        %1139 = vmatpush2.msra.mxu0 0.0
        %1140 = vmatprep.subr.mxu0 0.0
        %1141 = vmatpush2.msra.mxu0 0.0
        %1142 = vmatprep.subr.mxu0 0.0
        %1143 = vmatpush2.msra.mxu0 0.0
        %1144 = vmatprep.subr.mxu0 0.0
        %1145 = vmatpush2.msra.mxu0 0.0
        %1146 = vmatprep.subr.mxu0 0.0
        %1147 = vmatpush2.msra.mxu0 0.0
        %1148 = vmatprep.subr.mxu0 0.0
        %1149 = vmatpush2.msra.mxu0 0.0
        %1150 = vmatprep.subr.mxu0 0.0
        %1151 = vmatpush2.msra.mxu0 0.0
        %1152 = vmatprep.subr.mxu0 0.0
        %1153 = vmatpush2.msra.mxu0 0.0
        %1154 = vmatprep.mubr.f32.mxu0 0.0
        %v1155 = vand.u32 %v869, 4294901760
        %v1156 = vsub.f32 %v869, %v1155
        %1157 = vmatmul.mubr.f32.gmra.mxu0 %v1156
        %v1158 = vpop.f32.mrf.mxu0
        %v1159 = vadd.f32 %v1065, %v1158
        %v1160 = vpop.f32.mrf.mxu0
        %1161 = vmatprep.mubr.f32.mxu0 0.0
        %v1162 = vand.u32 %v872, 4294901760
        %v1163 = vsub.f32 %v872, %v1162
        %1164 = vmatmul.mubr.f32.gmra.mxu0 %v1163
        %v1165 = vpop.f32.mrf.mxu0
        %v1166 = vadd.f32 %v1071, %v1165
        %v1167 = vpop.f32.mrf.mxu0
        %1168 = vmatprep.mubr.f32.mxu0 0.0
        %v1169 = vand.u32 %v875, 4294901760
        %v1170 = vsub.f32 %v875, %v1169
        %1171 = vmatmul.mubr.f32.gmra.mxu0 %v1170
        %v1172 = vpop.f32.mrf.mxu0
        %v1173 = vadd.f32 %v1077, %v1172
        %v1174 = vpop.f32.mrf.mxu0
        %1175 = vmatprep.mubr.f32.mxu0 0.0
        %v1176 = vand.u32 %v878, 4294901760
        %v1177 = vsub.f32 %v878, %v1176
        %1178 = vmatmul.mubr.f32.gmra.mxu0 %v1177
        %v1179 = vpop.f32.mrf.mxu0
        %v1180 = vadd.f32 %v1083, %v1179
        %v1181 = vpop.f32.mrf.mxu0
        %1182 = vdwg.mxu0
        %1183 = vmatprep.subr.mxu0 0.0
        %1184 = vmatpush1.msra.mxu0 0.0
        %1185 = vmatprep.subr.mxu0 0.0
        %1186 = vmatpush1.msra.mxu0 0.0
        %1187 = vmatprep.subr.mxu0 0.0
        %1188 = vmatpush1.msra.mxu0 0.0
        %1189 = vmatprep.subr.mxu0 0.0
        %1190 = vmatpush1.msra.mxu0 0.0
        %1191 = vmatprep.subr.mxu0 0.0
        %1192 = vmatpush1.msra.mxu0 0.0
        %1193 = vmatprep.subr.mxu0 0.0
        %1194 = vmatpush1.msra.mxu0 0.0
        %1195 = vmatprep.subr.mxu0 0.0
        %1196 = vmatpush1.msra.mxu0 0.0
        %1197 = vmatprep.subr.mxu0 0.0
        %1198 = vmatpush1.msra.mxu0 0.0
        %1199 = vmatprep.subr.mxu0 0.0
        %1200 = vmatpush1.msra.mxu0 0.0
        %1201 = vmatprep.subr.mxu0 0.0
        %1202 = vmatpush1.msra.mxu0 0.0
        %1203 = vmatprep.subr.mxu0 0.0
        %1204 = vmatpush1.msra.mxu0 0.0
        %1205 = vmatprep.subr.mxu0 0.0
        %1206 = vmatpush1.msra.mxu0 0.0
        %1207 = vmatprep.subr.mxu0 0.0
        %1208 = vmatpush1.msra.mxu0 0.0
        %1209 = vmatprep.subr.mxu0 0.0
        %1210 = vmatpush1.msra.mxu0 0.0
        %1211 = vmatprep.subr.mxu0 0.0
        %v1212 = vand.u32 %v202, 4294901760
        %1213 = vmatpush1.msra.mxu0 %v1212
        %1214 = vmatprep.subr.mxu0 0.0
        %v1215 = vand.u32 %v201, 4294901760
        %1216 = vmatpush1.msra.mxu0 %v1215
        %1217 = vmatprep.subr.mxu0 0.0
        %1218 = vmatpush2.msra.mxu0 0.0
        %1219 = vmatprep.subr.mxu0 0.0
        %1220 = vmatpush2.msra.mxu0 0.0
        %1221 = vmatprep.subr.mxu0 0.0
        %1222 = vmatpush2.msra.mxu0 0.0
        %1223 = vmatprep.subr.mxu0 0.0
        %1224 = vmatpush2.msra.mxu0 0.0
        %1225 = vmatprep.subr.mxu0 0.0
        %1226 = vmatpush2.msra.mxu0 0.0
        %1227 = vmatprep.subr.mxu0 0.0
        %1228 = vmatpush2.msra.mxu0 0.0
        %1229 = vmatprep.subr.mxu0 0.0
        %1230 = vmatpush2.msra.mxu0 0.0
        %1231 = vmatprep.subr.mxu0 0.0
        %1232 = vmatpush2.msra.mxu0 0.0
        %1233 = vmatprep.subr.mxu0 0.0
        %1234 = vmatpush2.msra.mxu0 0.0
        %1235 = vmatprep.subr.mxu0 0.0
        %1236 = vmatpush2.msra.mxu0 0.0
        %1237 = vmatprep.subr.mxu0 0.0
        %1238 = vmatpush2.msra.mxu0 0.0
        %1239 = vmatprep.subr.mxu0 0.0
        %1240 = vmatpush2.msra.mxu0 0.0
        %1241 = vmatprep.subr.mxu0 0.0
        %1242 = vmatpush2.msra.mxu0 0.0
        %1243 = vmatprep.subr.mxu0 0.0
        %1244 = vmatpush2.msra.mxu0 0.0
        %1245 = vmatprep.subr.mxu0 0.0
        %1246 = vmatpush2.msra.mxu0 0.0
        %1247 = vmatprep.subr.mxu0 0.0
        %1248 = vmatpush2.msra.mxu0 0.0
        %1249 = vmatprep.mubr.f32.mxu0 0.0
        %v1250 = vand.u32 %v869, 4294901760
        %v1251 = vsub.f32 %v869, %v1250
        %v1252 = vand.u32 %v1251, 4294901760
        %1253 = vmatmul.mubr.f32.gmra.mxu0 %v1252
        %v1254 = vpop.f32.mrf.mxu0
        %v1255 = vadd.f32 %v1159, %v1254
        %v1256 = vpop.f32.mrf.mxu0
        %1257 = vmatprep.mubr.f32.mxu0 0.0
        %v1258 = vand.u32 %v872, 4294901760
        %v1259 = vsub.f32 %v872, %v1258
        %v1260 = vand.u32 %v1259, 4294901760
        %1261 = vmatmul.mubr.f32.gmra.mxu0 %v1260
        %v1262 = vpop.f32.mrf.mxu0
        %v1263 = vadd.f32 %v1166, %v1262
        %v1264 = vpop.f32.mrf.mxu0
        %1265 = vmatprep.mubr.f32.mxu0 0.0
        %v1266 = vand.u32 %v875, 4294901760
        %v1267 = vsub.f32 %v875, %v1266
        %v1268 = vand.u32 %v1267, 4294901760
        %1269 = vmatmul.mubr.f32.gmra.mxu0 %v1268
        %v1270 = vpop.f32.mrf.mxu0
        %v1271 = vadd.f32 %v1173, %v1270
        %v1272 = vpop.f32.mrf.mxu0
        %1273 = vmatprep.mubr.f32.mxu0 0.0
        %v1274 = vand.u32 %v878, 4294901760
        %v1275 = vsub.f32 %v878, %v1274
        %v1276 = vand.u32 %v1275, 4294901760
        %1277 = vmatmul.mubr.f32.gmra.mxu0 %v1276
        %v1278 = vpop.f32.mrf.mxu0
        %v1279 = vadd.f32 %v1180, %v1278
        %v1280 = vpop.f32.mrf.mxu0
        %1281 = vdwg.mxu0
        %1282 = vmatprep.subr.mxu0 0.0
        %1283 = vmatpush1.msra.mxu0 0.0
        %1284 = vmatprep.subr.mxu0 0.0
        %1285 = vmatpush1.msra.mxu0 0.0
        %1286 = vmatprep.subr.mxu0 0.0
        %1287 = vmatpush1.msra.mxu0 0.0
        %1288 = vmatprep.subr.mxu0 0.0
        %1289 = vmatpush1.msra.mxu0 0.0
        %1290 = vmatprep.subr.mxu0 0.0
        %1291 = vmatpush1.msra.mxu0 0.0
        %1292 = vmatprep.subr.mxu0 0.0
        %1293 = vmatpush1.msra.mxu0 0.0
        %1294 = vmatprep.subr.mxu0 0.0
        %1295 = vmatpush1.msra.mxu0 0.0
        %1296 = vmatprep.subr.mxu0 0.0
        %1297 = vmatpush1.msra.mxu0 0.0
        %1298 = vmatprep.subr.mxu0 0.0
        %1299 = vmatpush1.msra.mxu0 0.0
        %1300 = vmatprep.subr.mxu0 0.0
        %1301 = vmatpush1.msra.mxu0 0.0
        %1302 = vmatprep.subr.mxu0 0.0
        %1303 = vmatpush1.msra.mxu0 0.0
        %1304 = vmatprep.subr.mxu0 0.0
        %1305 = vmatpush1.msra.mxu0 0.0
        %1306 = vmatprep.subr.mxu0 0.0
        %1307 = vmatpush1.msra.mxu0 0.0
        %1308 = vmatprep.subr.mxu0 0.0
        %1309 = vmatpush1.msra.mxu0 0.0
        %1310 = vmatprep.subr.mxu0 0.0
        %v1311 = vand.u32 %v202, 4294901760
        %v1312 = vsub.f32 %v202, %v1311
        %v1313 = vand.u32 %v1312, 4294901760
        %1314 = vmatpush1.msra.mxu0 %v1313
        %1315 = vmatprep.subr.mxu0 0.0
        %v1316 = vand.u32 %v201, 4294901760
        %v1317 = vsub.f32 %v201, %v1316
        %v1318 = vand.u32 %v1317, 4294901760
        %1319 = vmatpush1.msra.mxu0 %v1318
        %1320 = vmatprep.subr.mxu0 0.0
        %1321 = vmatpush2.msra.mxu0 0.0
        %1322 = vmatprep.subr.mxu0 0.0
        %1323 = vmatpush2.msra.mxu0 0.0
        %1324 = vmatprep.subr.mxu0 0.0
        %1325 = vmatpush2.msra.mxu0 0.0
        %1326 = vmatprep.subr.mxu0 0.0
        %1327 = vmatpush2.msra.mxu0 0.0
        %1328 = vmatprep.subr.mxu0 0.0
        %1329 = vmatpush2.msra.mxu0 0.0
        %1330 = vmatprep.subr.mxu0 0.0
        %1331 = vmatpush2.msra.mxu0 0.0
        %1332 = vmatprep.subr.mxu0 0.0
        %1333 = vmatpush2.msra.mxu0 0.0
        %1334 = vmatprep.subr.mxu0 0.0
        %1335 = vmatpush2.msra.mxu0 0.0
        %1336 = vmatprep.subr.mxu0 0.0
        %1337 = vmatpush2.msra.mxu0 0.0
        %1338 = vmatprep.subr.mxu0 0.0
        %1339 = vmatpush2.msra.mxu0 0.0
        %1340 = vmatprep.subr.mxu0 0.0
        %1341 = vmatpush2.msra.mxu0 0.0
        %1342 = vmatprep.subr.mxu0 0.0
        %1343 = vmatpush2.msra.mxu0 0.0
        %1344 = vmatprep.subr.mxu0 0.0
        %1345 = vmatpush2.msra.mxu0 0.0
        %1346 = vmatprep.subr.mxu0 0.0
        %1347 = vmatpush2.msra.mxu0 0.0
        %1348 = vmatprep.subr.mxu0 0.0
        %1349 = vmatpush2.msra.mxu0 0.0
        %1350 = vmatprep.subr.mxu0 0.0
        %1351 = vmatpush2.msra.mxu0 0.0
        %1352 = vmatprep.mubr.f32.mxu0 0.0
        %v1353 = vand.u32 %v869, 4294901760
        %1354 = vmatmul.mubr.f32.gmra.mxu0 %v1353
        %v1355 = vpop.f32.mrf.mxu0
        %v1356 = vadd.f32 %v1255, %v1355
        %v1357 = vpop.f32.mrf.mxu0
        %1358 = vmatprep.mubr.f32.mxu0 0.0
        %v1359 = vand.u32 %v872, 4294901760
        %1360 = vmatmul.mubr.f32.gmra.mxu0 %v1359
        %v1361 = vpop.f32.mrf.mxu0
        %v1362 = vadd.f32 %v1263, %v1361
        %v1363 = vpop.f32.mrf.mxu0
        %1364 = vmatprep.mubr.f32.mxu0 0.0
        %v1365 = vand.u32 %v875, 4294901760
        %1366 = vmatmul.mubr.f32.gmra.mxu0 %v1365
        %v1367 = vpop.f32.mrf.mxu0
        %v1368 = vadd.f32 %v1271, %v1367
        %v1369 = vpop.f32.mrf.mxu0
        %1370 = vmatprep.mubr.f32.mxu0 0.0
        %v1371 = vand.u32 %v878, 4294901760
        %1372 = vmatmul.mubr.f32.gmra.mxu0 %v1371
        %v1373 = vpop.f32.mrf.mxu0
        %v1374 = vadd.f32 %v1279, %v1373
        %v1375 = vpop.f32.mrf.mxu0
        %1376 = vdwg.mxu0
        %1377 = vmatprep.subr.mxu0 0.0
        %1378 = vmatpush1.msra.mxu0 0.0
        %1379 = vmatprep.subr.mxu0 0.0
        %1380 = vmatpush1.msra.mxu0 0.0
        %1381 = vmatprep.subr.mxu0 0.0
        %1382 = vmatpush1.msra.mxu0 0.0
        %1383 = vmatprep.subr.mxu0 0.0
        %1384 = vmatpush1.msra.mxu0 0.0
        %1385 = vmatprep.subr.mxu0 0.0
        %1386 = vmatpush1.msra.mxu0 0.0
        %1387 = vmatprep.subr.mxu0 0.0
        %1388 = vmatpush1.msra.mxu0 0.0
        %1389 = vmatprep.subr.mxu0 0.0
        %1390 = vmatpush1.msra.mxu0 0.0
        %1391 = vmatprep.subr.mxu0 0.0
        %1392 = vmatpush1.msra.mxu0 0.0
        %1393 = vmatprep.subr.mxu0 0.0
        %1394 = vmatpush1.msra.mxu0 0.0
        %1395 = vmatprep.subr.mxu0 0.0
        %1396 = vmatpush1.msra.mxu0 0.0
        %1397 = vmatprep.subr.mxu0 0.0
        %1398 = vmatpush1.msra.mxu0 0.0
        %1399 = vmatprep.subr.mxu0 0.0
        %1400 = vmatpush1.msra.mxu0 0.0
        %1401 = vmatprep.subr.mxu0 0.0
        %1402 = vmatpush1.msra.mxu0 0.0
        %1403 = vmatprep.subr.mxu0 0.0
        %1404 = vmatpush1.msra.mxu0 0.0
        %1405 = vmatprep.subr.mxu0 0.0
        %v1406 = vand.u32 %v202, 4294901760
        %1407 = vmatpush1.msra.mxu0 %v1406
        %1408 = vmatprep.subr.mxu0 0.0
        %v1409 = vand.u32 %v201, 4294901760
        %1410 = vmatpush1.msra.mxu0 %v1409
        %1411 = vmatprep.subr.mxu0 0.0
        %1412 = vmatpush2.msra.mxu0 0.0
        %1413 = vmatprep.subr.mxu0 0.0
        %1414 = vmatpush2.msra.mxu0 0.0
        %1415 = vmatprep.subr.mxu0 0.0
        %1416 = vmatpush2.msra.mxu0 0.0
        %1417 = vmatprep.subr.mxu0 0.0
        %1418 = vmatpush2.msra.mxu0 0.0
        %1419 = vmatprep.subr.mxu0 0.0
        %1420 = vmatpush2.msra.mxu0 0.0
        %1421 = vmatprep.subr.mxu0 0.0
        %1422 = vmatpush2.msra.mxu0 0.0
        %1423 = vmatprep.subr.mxu0 0.0
        %1424 = vmatpush2.msra.mxu0 0.0
        %1425 = vmatprep.subr.mxu0 0.0
        %1426 = vmatpush2.msra.mxu0 0.0
        %1427 = vmatprep.subr.mxu0 0.0
        %1428 = vmatpush2.msra.mxu0 0.0
        %1429 = vmatprep.subr.mxu0 0.0
        %1430 = vmatpush2.msra.mxu0 0.0
        %1431 = vmatprep.subr.mxu0 0.0
        %1432 = vmatpush2.msra.mxu0 0.0
        %1433 = vmatprep.subr.mxu0 0.0
        %1434 = vmatpush2.msra.mxu0 0.0
        %1435 = vmatprep.subr.mxu0 0.0
        %1436 = vmatpush2.msra.mxu0 0.0
        %1437 = vmatprep.subr.mxu0 0.0
        %1438 = vmatpush2.msra.mxu0 0.0
        %1439 = vmatprep.subr.mxu0 0.0
        %1440 = vmatpush2.msra.mxu0 0.0
        %1441 = vmatprep.subr.mxu0 0.0
        %1442 = vmatpush2.msra.mxu0 0.0
        %1443 = vmatprep.mubr.f32.mxu0 0.0
        %v1444 = vand.u32 %v869, 4294901760
        %1445 = vmatmul.mubr.f32.gmra.mxu0 %v1444
        %v1446 = vpop.f32.mrf.mxu0
        %v1447 = vadd.f32 %v1356, %v1446
        %v1448 = vpop.f32.mrf.mxu0
        %1449 = vmatprep.mubr.f32.mxu0 0.0
        %v1450 = vand.u32 %v872, 4294901760
        %1451 = vmatmul.mubr.f32.gmra.mxu0 %v1450
        %v1452 = vpop.f32.mrf.mxu0
        %v1453 = vadd.f32 %v1362, %v1452
        %v1454 = vpop.f32.mrf.mxu0
        %1455 = vmatprep.mubr.f32.mxu0 0.0
        %v1456 = vand.u32 %v875, 4294901760
        %1457 = vmatmul.mubr.f32.gmra.mxu0 %v1456
        %v1458 = vpop.f32.mrf.mxu0
        %v1459 = vadd.f32 %v1368, %v1458
        %v1460 = vpop.f32.mrf.mxu0
        %1461 = vmatprep.mubr.f32.mxu0 0.0
        %v1462 = vand.u32 %v878, 4294901760
        %1463 = vmatmul.mubr.f32.gmra.mxu0 %v1462
        %v1464 = vpop.f32.mrf.mxu0
        %v1465 = vadd.f32 %v1374, %v1464
        %v1466 = vpop.f32.mrf.mxu0
        %1467 = vdwg.mxu0
        %1472 = vrot.lane.b32.xlu0 %v1447, 16
        %v1473 = vpop.permute.xlu0 %1472
        %1474 = vrot.lane.b32.xlu0 %v1453, 16
        %v1475 = vpop.permute.xlu0 %1474
        %1476 = vrot.lane.b32.xlu0 %v1459, 16
        %v1477 = vpop.permute.xlu0 %1476
        %1478 = vrot.lane.b32.xlu0 %v1465, 16
        %v1479 = vpop.permute.xlu0 %1478
        %vm1484 = vcmask 261248
        %1485 = vst.msk [vmem:[%s183] sm:$0xff] %vm1484, %v1473
        %1486 = vst.msk [vmem:[%s183 + $0x10] sm:$0xff] %vm1484, %v1475
        %1487 = vst.msk [vmem:[%s183 + $0x20] sm:$0xff] %vm1484, %v1477
        %1488 = vst.msk [vmem:[%s183 + $0x30] sm:$0xff] %vm1484, %v1479
        %s1489 = scalar_lea.vmem %s197, 128
        %v1490 = vld [vmem:[%s1489] sm:$0xff]
        %v1491 = vld [vmem:[%s1489 + $0x8] sm:$0xff]
        %v1492 = vld [vmem:[%s1489 + $0x10] sm:$0xff]
        %v1493 = vld [vmem:[%s1489 + $0x18] sm:$0xff]
        %s1494 = scalar_lea.vmem %s197, 160
        %v1495 = vld [vmem:[%s1494] sm:$0xff]
        %v1496 = vld [vmem:[%s1494 + $0x8] sm:$0xff]
        %v1497 = vld [vmem:[%s1494 + $0x10] sm:$0xff]
        %v1498 = vld [vmem:[%s1494 + $0x18] sm:$0xff]
        %1503 = vrot.lane.b32.xlu0 %v1495, 8
        %v1504 = vpop.permute.xlu0 %1503
        %1505 = vrot.lane.b32.xlu0 %v1496, 8
        %v1506 = vpop.permute.xlu0 %1505
        %1507 = vrot.lane.b32.xlu0 %v1497, 8
        %v1508 = vpop.permute.xlu0 %1507
        %1509 = vrot.lane.b32.xlu0 %v1498, 8
        %v1510 = vpop.permute.xlu0 %1509
        %v1515 = vsel %vm228, %v1490, %v1504
        %v1516 = vsel %vm228, %v1491, %v1506
        %v1517 = vsel %vm228, %v1492, %v1508
        %v1518 = vsel %vm228, %v1493, %v1510
        %v1520 = vsel %vm233, %v1515, 0
        %v1523 = vsel %vm233, %v1516, 0
        %v1526 = vsel %vm233, %v1517, 0
        %v1529 = vsel %vm233, %v1518, 0
        %1531 = vmatprep.subr.mxu0 0.0
        %1532 = vmatpush1.msra.mxu0 0.0
        %1533 = vmatprep.subr.mxu0 0.0
        %1534 = vmatpush1.msra.mxu0 0.0
        %1535 = vmatprep.subr.mxu0 0.0
        %1536 = vmatpush1.msra.mxu0 0.0
        %1537 = vmatprep.subr.mxu0 0.0
        %1538 = vmatpush1.msra.mxu0 0.0
        %1539 = vmatprep.subr.mxu0 0.0
        %1540 = vmatpush1.msra.mxu0 0.0
        %1541 = vmatprep.subr.mxu0 0.0
        %1542 = vmatpush1.msra.mxu0 0.0
        %1543 = vmatprep.subr.mxu0 0.0
        %1544 = vmatpush1.msra.mxu0 0.0
        %1545 = vmatprep.subr.mxu0 0.0
        %1546 = vmatpush1.msra.mxu0 0.0
        %1547 = vmatprep.subr.mxu0 0.0
        %1548 = vmatpush1.msra.mxu0 0.0
        %1549 = vmatprep.subr.mxu0 0.0
        %1550 = vmatpush1.msra.mxu0 0.0
        %1551 = vmatprep.subr.mxu0 0.0
        %1552 = vmatpush1.msra.mxu0 0.0
        %1553 = vmatprep.subr.mxu0 0.0
        %1554 = vmatpush1.msra.mxu0 0.0
        %1555 = vmatprep.subr.mxu0 0.0
        %1556 = vmatpush1.msra.mxu0 0.0
        %1557 = vmatprep.subr.mxu0 0.0
        %1558 = vmatpush1.msra.mxu0 0.0
        %1559 = vmatprep.subr.mxu0 0.0
        %v1560 = vand.u32 %v202, 4294901760
        %1561 = vmatpush1.msra.mxu0 %v1560
        %1562 = vmatprep.subr.mxu0 0.0
        %v1563 = vand.u32 %v201, 4294901760
        %1564 = vmatpush1.msra.mxu0 %v1563
        %1565 = vmatprep.subr.mxu0 0.0
        %1566 = vmatpush2.msra.mxu0 0.0
        %1567 = vmatprep.subr.mxu0 0.0
        %1568 = vmatpush2.msra.mxu0 0.0
        %1569 = vmatprep.subr.mxu0 0.0
        %1570 = vmatpush2.msra.mxu0 0.0
        %1571 = vmatprep.subr.mxu0 0.0
        %1572 = vmatpush2.msra.mxu0 0.0
        %1573 = vmatprep.subr.mxu0 0.0
        %1574 = vmatpush2.msra.mxu0 0.0
        %1575 = vmatprep.subr.mxu0 0.0
        %1576 = vmatpush2.msra.mxu0 0.0
        %1577 = vmatprep.subr.mxu0 0.0
        %1578 = vmatpush2.msra.mxu0 0.0
        %1579 = vmatprep.subr.mxu0 0.0
        %1580 = vmatpush2.msra.mxu0 0.0
        %1581 = vmatprep.subr.mxu0 0.0
        %1582 = vmatpush2.msra.mxu0 0.0
        %1583 = vmatprep.subr.mxu0 0.0
        %1584 = vmatpush2.msra.mxu0 0.0
        %1585 = vmatprep.subr.mxu0 0.0
        %1586 = vmatpush2.msra.mxu0 0.0
        %1587 = vmatprep.subr.mxu0 0.0
        %1588 = vmatpush2.msra.mxu0 0.0
        %1589 = vmatprep.subr.mxu0 0.0
        %1590 = vmatpush2.msra.mxu0 0.0
        %1591 = vmatprep.subr.mxu0 0.0
        %1592 = vmatpush2.msra.mxu0 0.0
        %1593 = vmatprep.subr.mxu0 0.0
        %1594 = vmatpush2.msra.mxu0 0.0
        %1595 = vmatprep.subr.mxu0 0.0
        %1596 = vmatpush2.msra.mxu0 0.0
        %1597 = vmatprep.mubr.f32.mxu0 0.0
        %v1598 = vand.u32 %v1520, 4294901760
        %v1599 = vsub.f32 %v1520, %v1598
        %v1600 = vand.u32 %v1599, 4294901760
        %v1601 = vsub.f32 %v1599, %v1600
        %v1602 = vand.u32 %v1601, 4294901760
        %1603 = vmatmul.mubr.f32.gmra.mxu0 %v1602
        %v1604 = vpop.f32.mrf.mxu0
        %v1605 = vadd.f32 0.0, %v1604
        %v1606 = vpop.f32.mrf.mxu0
        %1607 = vmatprep.mubr.f32.mxu0 0.0
        %v1608 = vand.u32 %v1523, 4294901760
        %v1609 = vsub.f32 %v1523, %v1608
        %v1610 = vand.u32 %v1609, 4294901760
        %v1611 = vsub.f32 %v1609, %v1610
        %v1612 = vand.u32 %v1611, 4294901760
        %1613 = vmatmul.mubr.f32.gmra.mxu0 %v1612
        %v1614 = vpop.f32.mrf.mxu0
        %v1615 = vadd.f32 0.0, %v1614
        %v1616 = vpop.f32.mrf.mxu0
        %1617 = vmatprep.mubr.f32.mxu0 0.0
        %v1618 = vand.u32 %v1526, 4294901760
        %v1619 = vsub.f32 %v1526, %v1618
        %v1620 = vand.u32 %v1619, 4294901760
        %v1621 = vsub.f32 %v1619, %v1620
        %v1622 = vand.u32 %v1621, 4294901760
        %1623 = vmatmul.mubr.f32.gmra.mxu0 %v1622
        %v1624 = vpop.f32.mrf.mxu0
        %v1625 = vadd.f32 0.0, %v1624
        %v1626 = vpop.f32.mrf.mxu0
        %1627 = vmatprep.mubr.f32.mxu0 0.0
        %v1628 = vand.u32 %v1529, 4294901760
        %v1629 = vsub.f32 %v1529, %v1628
        %v1630 = vand.u32 %v1629, 4294901760
        %v1631 = vsub.f32 %v1629, %v1630
        %v1632 = vand.u32 %v1631, 4294901760
        %1633 = vmatmul.mubr.f32.gmra.mxu0 %v1632
        %v1634 = vpop.f32.mrf.mxu0
        %v1635 = vadd.f32 0.0, %v1634
        %v1636 = vpop.f32.mrf.mxu0
        %1637 = vdwg.mxu0
        %1638 = vmatprep.subr.mxu0 0.0
        %1639 = vmatpush1.msra.mxu0 0.0
        %1640 = vmatprep.subr.mxu0 0.0
        %1641 = vmatpush1.msra.mxu0 0.0
        %1642 = vmatprep.subr.mxu0 0.0
        %1643 = vmatpush1.msra.mxu0 0.0
        %1644 = vmatprep.subr.mxu0 0.0
        %1645 = vmatpush1.msra.mxu0 0.0
        %1646 = vmatprep.subr.mxu0 0.0
        %1647 = vmatpush1.msra.mxu0 0.0
        %1648 = vmatprep.subr.mxu0 0.0
        %1649 = vmatpush1.msra.mxu0 0.0
        %1650 = vmatprep.subr.mxu0 0.0
        %1651 = vmatpush1.msra.mxu0 0.0
        %1652 = vmatprep.subr.mxu0 0.0
        %1653 = vmatpush1.msra.mxu0 0.0
        %1654 = vmatprep.subr.mxu0 0.0
        %1655 = vmatpush1.msra.mxu0 0.0
        %1656 = vmatprep.subr.mxu0 0.0
        %1657 = vmatpush1.msra.mxu0 0.0
        %1658 = vmatprep.subr.mxu0 0.0
        %1659 = vmatpush1.msra.mxu0 0.0
        %1660 = vmatprep.subr.mxu0 0.0
        %1661 = vmatpush1.msra.mxu0 0.0
        %1662 = vmatprep.subr.mxu0 0.0
        %1663 = vmatpush1.msra.mxu0 0.0
        %1664 = vmatprep.subr.mxu0 0.0
        %1665 = vmatpush1.msra.mxu0 0.0
        %1666 = vmatprep.subr.mxu0 0.0
        %v1667 = vand.u32 %v202, 4294901760
        %v1668 = vsub.f32 %v202, %v1667
        %v1669 = vand.u32 %v1668, 4294901760
        %v1670 = vsub.f32 %v1668, %v1669
        %v1671 = vand.u32 %v1670, 4294901760
        %1672 = vmatpush1.msra.mxu0 %v1671
        %1673 = vmatprep.subr.mxu0 0.0
        %v1674 = vand.u32 %v201, 4294901760
        %v1675 = vsub.f32 %v201, %v1674
        %v1676 = vand.u32 %v1675, 4294901760
        %v1677 = vsub.f32 %v1675, %v1676
        %v1678 = vand.u32 %v1677, 4294901760
        %1679 = vmatpush1.msra.mxu0 %v1678
        %1680 = vmatprep.subr.mxu0 0.0
        %1681 = vmatpush2.msra.mxu0 0.0
        %1682 = vmatprep.subr.mxu0 0.0
        %1683 = vmatpush2.msra.mxu0 0.0
        %1684 = vmatprep.subr.mxu0 0.0
        %1685 = vmatpush2.msra.mxu0 0.0
        %1686 = vmatprep.subr.mxu0 0.0
        %1687 = vmatpush2.msra.mxu0 0.0
        %1688 = vmatprep.subr.mxu0 0.0
        %1689 = vmatpush2.msra.mxu0 0.0
        %1690 = vmatprep.subr.mxu0 0.0
        %1691 = vmatpush2.msra.mxu0 0.0
        %1692 = vmatprep.subr.mxu0 0.0
        %1693 = vmatpush2.msra.mxu0 0.0
        %1694 = vmatprep.subr.mxu0 0.0
        %1695 = vmatpush2.msra.mxu0 0.0
        %1696 = vmatprep.subr.mxu0 0.0
        %1697 = vmatpush2.msra.mxu0 0.0
        %1698 = vmatprep.subr.mxu0 0.0
        %1699 = vmatpush2.msra.mxu0 0.0
        %1700 = vmatprep.subr.mxu0 0.0
        %1701 = vmatpush2.msra.mxu0 0.0
        %1702 = vmatprep.subr.mxu0 0.0
        %1703 = vmatpush2.msra.mxu0 0.0
        %1704 = vmatprep.subr.mxu0 0.0
        %1705 = vmatpush2.msra.mxu0 0.0
        %1706 = vmatprep.subr.mxu0 0.0
        %1707 = vmatpush2.msra.mxu0 0.0
        %1708 = vmatprep.subr.mxu0 0.0
        %1709 = vmatpush2.msra.mxu0 0.0
        %1710 = vmatprep.subr.mxu0 0.0
        %1711 = vmatpush2.msra.mxu0 0.0
        %1712 = vmatprep.mubr.f32.mxu0 0.0
        %v1713 = vand.u32 %v1520, 4294901760
        %1714 = vmatmul.mubr.f32.gmra.mxu0 %v1713
        %v1715 = vpop.f32.mrf.mxu0
        %v1716 = vadd.f32 %v1605, %v1715
        %v1717 = vpop.f32.mrf.mxu0
        %1718 = vmatprep.mubr.f32.mxu0 0.0
        %v1719 = vand.u32 %v1523, 4294901760
        %1720 = vmatmul.mubr.f32.gmra.mxu0 %v1719
        %v1721 = vpop.f32.mrf.mxu0
        %v1722 = vadd.f32 %v1615, %v1721
        %v1723 = vpop.f32.mrf.mxu0
        %1724 = vmatprep.mubr.f32.mxu0 0.0
        %v1725 = vand.u32 %v1526, 4294901760
        %1726 = vmatmul.mubr.f32.gmra.mxu0 %v1725
        %v1727 = vpop.f32.mrf.mxu0
        %v1728 = vadd.f32 %v1625, %v1727
        %v1729 = vpop.f32.mrf.mxu0
        %1730 = vmatprep.mubr.f32.mxu0 0.0
        %v1731 = vand.u32 %v1529, 4294901760
        %1732 = vmatmul.mubr.f32.gmra.mxu0 %v1731
        %v1733 = vpop.f32.mrf.mxu0
        %v1734 = vadd.f32 %v1635, %v1733
        %v1735 = vpop.f32.mrf.mxu0
        %1736 = vdwg.mxu0
        %1737 = vmatprep.subr.mxu0 0.0
        %1738 = vmatpush1.msra.mxu0 0.0
        %1739 = vmatprep.subr.mxu0 0.0
        %1740 = vmatpush1.msra.mxu0 0.0
        %1741 = vmatprep.subr.mxu0 0.0
        %1742 = vmatpush1.msra.mxu0 0.0
        %1743 = vmatprep.subr.mxu0 0.0
        %1744 = vmatpush1.msra.mxu0 0.0
        %1745 = vmatprep.subr.mxu0 0.0
        %1746 = vmatpush1.msra.mxu0 0.0
        %1747 = vmatprep.subr.mxu0 0.0
        %1748 = vmatpush1.msra.mxu0 0.0
        %1749 = vmatprep.subr.mxu0 0.0
        %1750 = vmatpush1.msra.mxu0 0.0
        %1751 = vmatprep.subr.mxu0 0.0
        %1752 = vmatpush1.msra.mxu0 0.0
        %1753 = vmatprep.subr.mxu0 0.0
        %1754 = vmatpush1.msra.mxu0 0.0
        %1755 = vmatprep.subr.mxu0 0.0
        %1756 = vmatpush1.msra.mxu0 0.0
        %1757 = vmatprep.subr.mxu0 0.0
        %1758 = vmatpush1.msra.mxu0 0.0
        %1759 = vmatprep.subr.mxu0 0.0
        %1760 = vmatpush1.msra.mxu0 0.0
        %1761 = vmatprep.subr.mxu0 0.0
        %1762 = vmatpush1.msra.mxu0 0.0
        %1763 = vmatprep.subr.mxu0 0.0
        %1764 = vmatpush1.msra.mxu0 0.0
        %1765 = vmatprep.subr.mxu0 0.0
        %v1766 = vand.u32 %v202, 4294901760
        %v1767 = vsub.f32 %v202, %v1766
        %1768 = vmatpush1.msra.mxu0 %v1767
        %1769 = vmatprep.subr.mxu0 0.0
        %v1770 = vand.u32 %v201, 4294901760
        %v1771 = vsub.f32 %v201, %v1770
        %1772 = vmatpush1.msra.mxu0 %v1771
        %1773 = vmatprep.subr.mxu0 0.0
        %1774 = vmatpush2.msra.mxu0 0.0
        %1775 = vmatprep.subr.mxu0 0.0
        %1776 = vmatpush2.msra.mxu0 0.0
        %1777 = vmatprep.subr.mxu0 0.0
        %1778 = vmatpush2.msra.mxu0 0.0
        %1779 = vmatprep.subr.mxu0 0.0
        %1780 = vmatpush2.msra.mxu0 0.0
        %1781 = vmatprep.subr.mxu0 0.0
        %1782 = vmatpush2.msra.mxu0 0.0
        %1783 = vmatprep.subr.mxu0 0.0
        %1784 = vmatpush2.msra.mxu0 0.0
        %1785 = vmatprep.subr.mxu0 0.0
        %1786 = vmatpush2.msra.mxu0 0.0
        %1787 = vmatprep.subr.mxu0 0.0
        %1788 = vmatpush2.msra.mxu0 0.0
        %1789 = vmatprep.subr.mxu0 0.0
        %1790 = vmatpush2.msra.mxu0 0.0
        %1791 = vmatprep.subr.mxu0 0.0
        %1792 = vmatpush2.msra.mxu0 0.0
        %1793 = vmatprep.subr.mxu0 0.0
        %1794 = vmatpush2.msra.mxu0 0.0
        %1795 = vmatprep.subr.mxu0 0.0
        %1796 = vmatpush2.msra.mxu0 0.0
        %1797 = vmatprep.subr.mxu0 0.0
        %1798 = vmatpush2.msra.mxu0 0.0
        %1799 = vmatprep.subr.mxu0 0.0
        %1800 = vmatpush2.msra.mxu0 0.0
        %1801 = vmatprep.subr.mxu0 0.0
        %1802 = vmatpush2.msra.mxu0 0.0
        %1803 = vmatprep.subr.mxu0 0.0
        %1804 = vmatpush2.msra.mxu0 0.0
        %1805 = vmatprep.mubr.f32.mxu0 0.0
        %v1806 = vand.u32 %v1520, 4294901760
        %v1807 = vsub.f32 %v1520, %v1806
        %1808 = vmatmul.mubr.f32.gmra.mxu0 %v1807
        %v1809 = vpop.f32.mrf.mxu0
        %v1810 = vadd.f32 %v1716, %v1809
        %v1811 = vpop.f32.mrf.mxu0
        %1812 = vmatprep.mubr.f32.mxu0 0.0
        %v1813 = vand.u32 %v1523, 4294901760
        %v1814 = vsub.f32 %v1523, %v1813
        %1815 = vmatmul.mubr.f32.gmra.mxu0 %v1814
        %v1816 = vpop.f32.mrf.mxu0
        %v1817 = vadd.f32 %v1722, %v1816
        %v1818 = vpop.f32.mrf.mxu0
        %1819 = vmatprep.mubr.f32.mxu0 0.0
        %v1820 = vand.u32 %v1526, 4294901760
        %v1821 = vsub.f32 %v1526, %v1820
        %1822 = vmatmul.mubr.f32.gmra.mxu0 %v1821
        %v1823 = vpop.f32.mrf.mxu0
        %v1824 = vadd.f32 %v1728, %v1823
        %v1825 = vpop.f32.mrf.mxu0
        %1826 = vmatprep.mubr.f32.mxu0 0.0
        %v1827 = vand.u32 %v1529, 4294901760
        %v1828 = vsub.f32 %v1529, %v1827
        %1829 = vmatmul.mubr.f32.gmra.mxu0 %v1828
        %v1830 = vpop.f32.mrf.mxu0
        %v1831 = vadd.f32 %v1734, %v1830
        %v1832 = vpop.f32.mrf.mxu0
        %1833 = vdwg.mxu0
        %1834 = vmatprep.subr.mxu0 0.0
        %1835 = vmatpush1.msra.mxu0 0.0
        %1836 = vmatprep.subr.mxu0 0.0
        %1837 = vmatpush1.msra.mxu0 0.0
        %1838 = vmatprep.subr.mxu0 0.0
        %1839 = vmatpush1.msra.mxu0 0.0
        %1840 = vmatprep.subr.mxu0 0.0
        %1841 = vmatpush1.msra.mxu0 0.0
        %1842 = vmatprep.subr.mxu0 0.0
        %1843 = vmatpush1.msra.mxu0 0.0
        %1844 = vmatprep.subr.mxu0 0.0
        %1845 = vmatpush1.msra.mxu0 0.0
        %1846 = vmatprep.subr.mxu0 0.0
        %1847 = vmatpush1.msra.mxu0 0.0
        %1848 = vmatprep.subr.mxu0 0.0
        %1849 = vmatpush1.msra.mxu0 0.0
        %1850 = vmatprep.subr.mxu0 0.0
        %1851 = vmatpush1.msra.mxu0 0.0
        %1852 = vmatprep.subr.mxu0 0.0
        %1853 = vmatpush1.msra.mxu0 0.0
        %1854 = vmatprep.subr.mxu0 0.0
        %1855 = vmatpush1.msra.mxu0 0.0
        %1856 = vmatprep.subr.mxu0 0.0
        %1857 = vmatpush1.msra.mxu0 0.0
        %1858 = vmatprep.subr.mxu0 0.0
        %1859 = vmatpush1.msra.mxu0 0.0
        %1860 = vmatprep.subr.mxu0 0.0
        %1861 = vmatpush1.msra.mxu0 0.0
        %1862 = vmatprep.subr.mxu0 0.0
        %v1863 = vand.u32 %v202, 4294901760
        %1864 = vmatpush1.msra.mxu0 %v1863
        %1865 = vmatprep.subr.mxu0 0.0
        %v1866 = vand.u32 %v201, 4294901760
        %1867 = vmatpush1.msra.mxu0 %v1866
        %1868 = vmatprep.subr.mxu0 0.0
        %1869 = vmatpush2.msra.mxu0 0.0
        %1870 = vmatprep.subr.mxu0 0.0
        %1871 = vmatpush2.msra.mxu0 0.0
        %1872 = vmatprep.subr.mxu0 0.0
        %1873 = vmatpush2.msra.mxu0 0.0
        %1874 = vmatprep.subr.mxu0 0.0
        %1875 = vmatpush2.msra.mxu0 0.0
        %1876 = vmatprep.subr.mxu0 0.0
        %1877 = vmatpush2.msra.mxu0 0.0
        %1878 = vmatprep.subr.mxu0 0.0
        %1879 = vmatpush2.msra.mxu0 0.0
        %1880 = vmatprep.subr.mxu0 0.0
        %1881 = vmatpush2.msra.mxu0 0.0
        %1882 = vmatprep.subr.mxu0 0.0
        %1883 = vmatpush2.msra.mxu0 0.0
        %1884 = vmatprep.subr.mxu0 0.0
        %1885 = vmatpush2.msra.mxu0 0.0
        %1886 = vmatprep.subr.mxu0 0.0
        %1887 = vmatpush2.msra.mxu0 0.0
        %1888 = vmatprep.subr.mxu0 0.0
        %1889 = vmatpush2.msra.mxu0 0.0
        %1890 = vmatprep.subr.mxu0 0.0
        %1891 = vmatpush2.msra.mxu0 0.0
        %1892 = vmatprep.subr.mxu0 0.0
        %1893 = vmatpush2.msra.mxu0 0.0
        %1894 = vmatprep.subr.mxu0 0.0
        %1895 = vmatpush2.msra.mxu0 0.0
        %1896 = vmatprep.subr.mxu0 0.0
        %1897 = vmatpush2.msra.mxu0 0.0
        %1898 = vmatprep.subr.mxu0 0.0
        %1899 = vmatpush2.msra.mxu0 0.0
        %1900 = vmatprep.mubr.f32.mxu0 0.0
        %v1901 = vand.u32 %v1520, 4294901760
        %v1902 = vsub.f32 %v1520, %v1901
        %v1903 = vand.u32 %v1902, 4294901760
        %1904 = vmatmul.mubr.f32.gmra.mxu0 %v1903
        %v1905 = vpop.f32.mrf.mxu0
        %v1906 = vadd.f32 %v1810, %v1905
        %v1907 = vpop.f32.mrf.mxu0
        %1908 = vmatprep.mubr.f32.mxu0 0.0
        %v1909 = vand.u32 %v1523, 4294901760
        %v1910 = vsub.f32 %v1523, %v1909
        %v1911 = vand.u32 %v1910, 4294901760
        %1912 = vmatmul.mubr.f32.gmra.mxu0 %v1911
        %v1913 = vpop.f32.mrf.mxu0
        %v1914 = vadd.f32 %v1817, %v1913
        %v1915 = vpop.f32.mrf.mxu0
        %1916 = vmatprep.mubr.f32.mxu0 0.0
        %v1917 = vand.u32 %v1526, 4294901760
        %v1918 = vsub.f32 %v1526, %v1917
        %v1919 = vand.u32 %v1918, 4294901760
        %1920 = vmatmul.mubr.f32.gmra.mxu0 %v1919
        %v1921 = vpop.f32.mrf.mxu0
        %v1922 = vadd.f32 %v1824, %v1921
        %v1923 = vpop.f32.mrf.mxu0
        %1924 = vmatprep.mubr.f32.mxu0 0.0
        %v1925 = vand.u32 %v1529, 4294901760
        %v1926 = vsub.f32 %v1529, %v1925
        %v1927 = vand.u32 %v1926, 4294901760
        %1928 = vmatmul.mubr.f32.gmra.mxu0 %v1927
        %v1929 = vpop.f32.mrf.mxu0
        %v1930 = vadd.f32 %v1831, %v1929
        %v1931 = vpop.f32.mrf.mxu0
        %1932 = vdwg.mxu0
        %1933 = vmatprep.subr.mxu0 0.0
        %1934 = vmatpush1.msra.mxu0 0.0
        %1935 = vmatprep.subr.mxu0 0.0
        %1936 = vmatpush1.msra.mxu0 0.0
        %1937 = vmatprep.subr.mxu0 0.0
        %1938 = vmatpush1.msra.mxu0 0.0
        %1939 = vmatprep.subr.mxu0 0.0
        %1940 = vmatpush1.msra.mxu0 0.0
        %1941 = vmatprep.subr.mxu0 0.0
        %1942 = vmatpush1.msra.mxu0 0.0
        %1943 = vmatprep.subr.mxu0 0.0
        %1944 = vmatpush1.msra.mxu0 0.0
        %1945 = vmatprep.subr.mxu0 0.0
        %1946 = vmatpush1.msra.mxu0 0.0
        %1947 = vmatprep.subr.mxu0 0.0
        %1948 = vmatpush1.msra.mxu0 0.0
        %1949 = vmatprep.subr.mxu0 0.0
        %1950 = vmatpush1.msra.mxu0 0.0
        %1951 = vmatprep.subr.mxu0 0.0
        %1952 = vmatpush1.msra.mxu0 0.0
        %1953 = vmatprep.subr.mxu0 0.0
        %1954 = vmatpush1.msra.mxu0 0.0
        %1955 = vmatprep.subr.mxu0 0.0
        %1956 = vmatpush1.msra.mxu0 0.0
        %1957 = vmatprep.subr.mxu0 0.0
        %1958 = vmatpush1.msra.mxu0 0.0
        %1959 = vmatprep.subr.mxu0 0.0
        %1960 = vmatpush1.msra.mxu0 0.0
        %1961 = vmatprep.subr.mxu0 0.0
        %v1962 = vand.u32 %v202, 4294901760
        %v1963 = vsub.f32 %v202, %v1962
        %v1964 = vand.u32 %v1963, 4294901760
        %1965 = vmatpush1.msra.mxu0 %v1964
        %1966 = vmatprep.subr.mxu0 0.0
        %v1967 = vand.u32 %v201, 4294901760
        %v1968 = vsub.f32 %v201, %v1967
        %v1969 = vand.u32 %v1968, 4294901760
        %1970 = vmatpush1.msra.mxu0 %v1969
        %1971 = vmatprep.subr.mxu0 0.0
        %1972 = vmatpush2.msra.mxu0 0.0
        %1973 = vmatprep.subr.mxu0 0.0
        %1974 = vmatpush2.msra.mxu0 0.0
        %1975 = vmatprep.subr.mxu0 0.0
        %1976 = vmatpush2.msra.mxu0 0.0
        %1977 = vmatprep.subr.mxu0 0.0
        %1978 = vmatpush2.msra.mxu0 0.0
        %1979 = vmatprep.subr.mxu0 0.0
        %1980 = vmatpush2.msra.mxu0 0.0
        %1981 = vmatprep.subr.mxu0 0.0
        %1982 = vmatpush2.msra.mxu0 0.0
        %1983 = vmatprep.subr.mxu0 0.0
        %1984 = vmatpush2.msra.mxu0 0.0
        %1985 = vmatprep.subr.mxu0 0.0
        %1986 = vmatpush2.msra.mxu0 0.0
        %1987 = vmatprep.subr.mxu0 0.0
        %1988 = vmatpush2.msra.mxu0 0.0
        %1989 = vmatprep.subr.mxu0 0.0
        %1990 = vmatpush2.msra.mxu0 0.0
        %1991 = vmatprep.subr.mxu0 0.0
        %1992 = vmatpush2.msra.mxu0 0.0
        %1993 = vmatprep.subr.mxu0 0.0
        %1994 = vmatpush2.msra.mxu0 0.0
        %1995 = vmatprep.subr.mxu0 0.0
        %1996 = vmatpush2.msra.mxu0 0.0
        %1997 = vmatprep.subr.mxu0 0.0
        %1998 = vmatpush2.msra.mxu0 0.0
        %1999 = vmatprep.subr.mxu0 0.0
        %2000 = vmatpush2.msra.mxu0 0.0
        %2001 = vmatprep.subr.mxu0 0.0
        %2002 = vmatpush2.msra.mxu0 0.0
        %2003 = vmatprep.mubr.f32.mxu0 0.0
        %v2004 = vand.u32 %v1520, 4294901760
        %2005 = vmatmul.mubr.f32.gmra.mxu0 %v2004
        %v2006 = vpop.f32.mrf.mxu0
        %v2007 = vadd.f32 %v1906, %v2006
        %v2008 = vpop.f32.mrf.mxu0
        %2009 = vmatprep.mubr.f32.mxu0 0.0
        %v2010 = vand.u32 %v1523, 4294901760
        %2011 = vmatmul.mubr.f32.gmra.mxu0 %v2010
        %v2012 = vpop.f32.mrf.mxu0
        %v2013 = vadd.f32 %v1914, %v2012
        %v2014 = vpop.f32.mrf.mxu0
        %2015 = vmatprep.mubr.f32.mxu0 0.0
        %v2016 = vand.u32 %v1526, 4294901760
        %2017 = vmatmul.mubr.f32.gmra.mxu0 %v2016
        %v2018 = vpop.f32.mrf.mxu0
        %v2019 = vadd.f32 %v1922, %v2018
        %v2020 = vpop.f32.mrf.mxu0
        %2021 = vmatprep.mubr.f32.mxu0 0.0
        %v2022 = vand.u32 %v1529, 4294901760
        %2023 = vmatmul.mubr.f32.gmra.mxu0 %v2022
        %v2024 = vpop.f32.mrf.mxu0
        %v2025 = vadd.f32 %v1930, %v2024
        %v2026 = vpop.f32.mrf.mxu0
        %2027 = vdwg.mxu0
        %2028 = vmatprep.subr.mxu0 0.0
        %2029 = vmatpush1.msra.mxu0 0.0
        %2030 = vmatprep.subr.mxu0 0.0
        %2031 = vmatpush1.msra.mxu0 0.0
        %2032 = vmatprep.subr.mxu0 0.0
        %2033 = vmatpush1.msra.mxu0 0.0
        %2034 = vmatprep.subr.mxu0 0.0
        %2035 = vmatpush1.msra.mxu0 0.0
        %2036 = vmatprep.subr.mxu0 0.0
        %2037 = vmatpush1.msra.mxu0 0.0
        %2038 = vmatprep.subr.mxu0 0.0
        %2039 = vmatpush1.msra.mxu0 0.0
        %2040 = vmatprep.subr.mxu0 0.0
        %2041 = vmatpush1.msra.mxu0 0.0
        %2042 = vmatprep.subr.mxu0 0.0
        %2043 = vmatpush1.msra.mxu0 0.0
        %2044 = vmatprep.subr.mxu0 0.0
        %2045 = vmatpush1.msra.mxu0 0.0
        %2046 = vmatprep.subr.mxu0 0.0
        %2047 = vmatpush1.msra.mxu0 0.0
        %2048 = vmatprep.subr.mxu0 0.0
        %2049 = vmatpush1.msra.mxu0 0.0
        %2050 = vmatprep.subr.mxu0 0.0
        %2051 = vmatpush1.msra.mxu0 0.0
        %2052 = vmatprep.subr.mxu0 0.0
        %2053 = vmatpush1.msra.mxu0 0.0
        %2054 = vmatprep.subr.mxu0 0.0
        %2055 = vmatpush1.msra.mxu0 0.0
        %2056 = vmatprep.subr.mxu0 0.0
        %v2057 = vand.u32 %v202, 4294901760
        %2058 = vmatpush1.msra.mxu0 %v2057
        %2059 = vmatprep.subr.mxu0 0.0
        %v2060 = vand.u32 %v201, 4294901760
        %2061 = vmatpush1.msra.mxu0 %v2060
        %2062 = vmatprep.subr.mxu0 0.0
        %2063 = vmatpush2.msra.mxu0 0.0
        %2064 = vmatprep.subr.mxu0 0.0
        %2065 = vmatpush2.msra.mxu0 0.0
        %2066 = vmatprep.subr.mxu0 0.0
        %2067 = vmatpush2.msra.mxu0 0.0
        %2068 = vmatprep.subr.mxu0 0.0
        %2069 = vmatpush2.msra.mxu0 0.0
        %2070 = vmatprep.subr.mxu0 0.0
        %2071 = vmatpush2.msra.mxu0 0.0
        %2072 = vmatprep.subr.mxu0 0.0
        %2073 = vmatpush2.msra.mxu0 0.0
        %2074 = vmatprep.subr.mxu0 0.0
        %2075 = vmatpush2.msra.mxu0 0.0
        %2076 = vmatprep.subr.mxu0 0.0
        %2077 = vmatpush2.msra.mxu0 0.0
        %2078 = vmatprep.subr.mxu0 0.0
        %2079 = vmatpush2.msra.mxu0 0.0
        %2080 = vmatprep.subr.mxu0 0.0
        %2081 = vmatpush2.msra.mxu0 0.0
        %2082 = vmatprep.subr.mxu0 0.0
        %2083 = vmatpush2.msra.mxu0 0.0
        %2084 = vmatprep.subr.mxu0 0.0
        %2085 = vmatpush2.msra.mxu0 0.0
        %2086 = vmatprep.subr.mxu0 0.0
        %2087 = vmatpush2.msra.mxu0 0.0
        %2088 = vmatprep.subr.mxu0 0.0
        %2089 = vmatpush2.msra.mxu0 0.0
        %2090 = vmatprep.subr.mxu0 0.0
        %2091 = vmatpush2.msra.mxu0 0.0
        %2092 = vmatprep.subr.mxu0 0.0
        %2093 = vmatpush2.msra.mxu0 0.0
        %2094 = vmatprep.mubr.f32.mxu0 0.0
        %v2095 = vand.u32 %v1520, 4294901760
        %2096 = vmatmul.mubr.f32.gmra.mxu0 %v2095
        %v2097 = vpop.f32.mrf.mxu0
        %v2098 = vadd.f32 %v2007, %v2097
        %v2099 = vpop.f32.mrf.mxu0
        %2100 = vmatprep.mubr.f32.mxu0 0.0
        %v2101 = vand.u32 %v1523, 4294901760
        %2102 = vmatmul.mubr.f32.gmra.mxu0 %v2101
        %v2103 = vpop.f32.mrf.mxu0
        %v2104 = vadd.f32 %v2013, %v2103
        %v2105 = vpop.f32.mrf.mxu0
        %2106 = vmatprep.mubr.f32.mxu0 0.0
        %v2107 = vand.u32 %v1526, 4294901760
        %2108 = vmatmul.mubr.f32.gmra.mxu0 %v2107
        %v2109 = vpop.f32.mrf.mxu0
        %v2110 = vadd.f32 %v2019, %v2109
        %v2111 = vpop.f32.mrf.mxu0
        %2112 = vmatprep.mubr.f32.mxu0 0.0
        %v2113 = vand.u32 %v1529, 4294901760
        %2114 = vmatmul.mubr.f32.gmra.mxu0 %v2113
        %v2115 = vpop.f32.mrf.mxu0
        %v2116 = vadd.f32 %v2025, %v2115
        %v2117 = vpop.f32.mrf.mxu0
        %2118 = vdwg.mxu0
        %s2119 = scalar_lea.vmem %s183, 8 [#allocation2]
        %2120 = vst.msk [vmem:[%s2119] sm:$0xff] %vm233, %v2098
        %2121 = vst.msk [vmem:[%s2119 + $0x10] sm:$0xff] %vm233, %v2104
        %2122 = vst.msk [vmem:[%s2119 + $0x20] sm:$0xff] %vm233, %v2110
        %2123 = vst.msk [vmem:[%s2119 + $0x30] sm:$0xff] %vm233, %v2116
        %s2124 = scalar_lea.vmem %s197, 192
        %v2125 = vld [vmem:[%s2124] sm:$0xff]
        %v2126 = vld [vmem:[%s2124 + $0x8] sm:$0xff]
        %v2127 = vld [vmem:[%s2124 + $0x10] sm:$0xff]
        %v2128 = vld [vmem:[%s2124 + $0x18] sm:$0xff]
        %s2129 = scalar_lea.vmem %s197, 224
        %v2130 = vld [vmem:[%s2129] sm:$0xff]
        %v2131 = vld [vmem:[%s2129 + $0x8] sm:$0xff]
        %v2132 = vld [vmem:[%s2129 + $0x10] sm:$0xff]
        %v2133 = vld [vmem:[%s2129 + $0x18] sm:$0xff]
        %2138 = vrot.lane.b32.xlu0 %v2130, 8
        %v2139 = vpop.permute.xlu0 %2138
        %2140 = vrot.lane.b32.xlu0 %v2131, 8
        %v2141 = vpop.permute.xlu0 %2140
        %2142 = vrot.lane.b32.xlu0 %v2132, 8
        %v2143 = vpop.permute.xlu0 %2142
        %2144 = vrot.lane.b32.xlu0 %v2133, 8
        %v2145 = vpop.permute.xlu0 %2144
        %v2150 = vsel %vm228, %v2125, %v2139
        %v2151 = vsel %vm228, %v2126, %v2141
        %v2152 = vsel %vm228, %v2127, %v2143
        %v2153 = vsel %vm228, %v2128, %v2145
        %v2155 = vsel %vm233, %v2150, 0
        %v2158 = vsel %vm233, %v2151, 0
        %v2161 = vsel %vm233, %v2152, 0
        %v2164 = vsel %vm233, %v2153, 0
        %2166 = vmatprep.subr.mxu0 0.0
        %2167 = vmatpush1.msra.mxu0 0.0
        %2168 = vmatprep.subr.mxu0 0.0
        %2169 = vmatpush1.msra.mxu0 0.0
        %2170 = vmatprep.subr.mxu0 0.0
        %2171 = vmatpush1.msra.mxu0 0.0
        %2172 = vmatprep.subr.mxu0 0.0
        %2173 = vmatpush1.msra.mxu0 0.0
        %2174 = vmatprep.subr.mxu0 0.0
        %2175 = vmatpush1.msra.mxu0 0.0
        %2176 = vmatprep.subr.mxu0 0.0
        %2177 = vmatpush1.msra.mxu0 0.0
        %2178 = vmatprep.subr.mxu0 0.0
        %2179 = vmatpush1.msra.mxu0 0.0
        %2180 = vmatprep.subr.mxu0 0.0
        %2181 = vmatpush1.msra.mxu0 0.0
        %2182 = vmatprep.subr.mxu0 0.0
        %2183 = vmatpush1.msra.mxu0 0.0
        %2184 = vmatprep.subr.mxu0 0.0
        %2185 = vmatpush1.msra.mxu0 0.0
        %2186 = vmatprep.subr.mxu0 0.0
        %2187 = vmatpush1.msra.mxu0 0.0
        %2188 = vmatprep.subr.mxu0 0.0
        %2189 = vmatpush1.msra.mxu0 0.0
        %2190 = vmatprep.subr.mxu0 0.0
        %2191 = vmatpush1.msra.mxu0 0.0
        %2192 = vmatprep.subr.mxu0 0.0
        %2193 = vmatpush1.msra.mxu0 0.0
        %2194 = vmatprep.subr.mxu0 0.0
        %v2195 = vand.u32 %v202, 4294901760
        %2196 = vmatpush1.msra.mxu0 %v2195
        %2197 = vmatprep.subr.mxu0 0.0
        %v2198 = vand.u32 %v201, 4294901760
        %2199 = vmatpush1.msra.mxu0 %v2198
        %2200 = vmatprep.subr.mxu0 0.0
        %2201 = vmatpush2.msra.mxu0 0.0
        %2202 = vmatprep.subr.mxu0 0.0
        %2203 = vmatpush2.msra.mxu0 0.0
        %2204 = vmatprep.subr.mxu0 0.0
        %2205 = vmatpush2.msra.mxu0 0.0
        %2206 = vmatprep.subr.mxu0 0.0
        %2207 = vmatpush2.msra.mxu0 0.0
        %2208 = vmatprep.subr.mxu0 0.0
        %2209 = vmatpush2.msra.mxu0 0.0
        %2210 = vmatprep.subr.mxu0 0.0
        %2211 = vmatpush2.msra.mxu0 0.0
        %2212 = vmatprep.subr.mxu0 0.0
        %2213 = vmatpush2.msra.mxu0 0.0
        %2214 = vmatprep.subr.mxu0 0.0
        %2215 = vmatpush2.msra.mxu0 0.0
        %2216 = vmatprep.subr.mxu0 0.0
        %2217 = vmatpush2.msra.mxu0 0.0
        %2218 = vmatprep.subr.mxu0 0.0
        %2219 = vmatpush2.msra.mxu0 0.0
        %2220 = vmatprep.subr.mxu0 0.0
        %2221 = vmatpush2.msra.mxu0 0.0
        %2222 = vmatprep.subr.mxu0 0.0
        %2223 = vmatpush2.msra.mxu0 0.0
        %2224 = vmatprep.subr.mxu0 0.0
        %2225 = vmatpush2.msra.mxu0 0.0
        %2226 = vmatprep.subr.mxu0 0.0
        %2227 = vmatpush2.msra.mxu0 0.0
        %2228 = vmatprep.subr.mxu0 0.0
        %2229 = vmatpush2.msra.mxu0 0.0
        %2230 = vmatprep.subr.mxu0 0.0
        %2231 = vmatpush2.msra.mxu0 0.0
        %2232 = vmatprep.mubr.f32.mxu0 0.0
        %v2233 = vand.u32 %v2155, 4294901760
        %v2234 = vsub.f32 %v2155, %v2233
        %v2235 = vand.u32 %v2234, 4294901760
        %v2236 = vsub.f32 %v2234, %v2235
        %v2237 = vand.u32 %v2236, 4294901760
        %2238 = vmatmul.mubr.f32.gmra.mxu0 %v2237
        %v2239 = vpop.f32.mrf.mxu0
        %v2240 = vadd.f32 0.0, %v2239
        %v2241 = vpop.f32.mrf.mxu0
        %2242 = vmatprep.mubr.f32.mxu0 0.0
        %v2243 = vand.u32 %v2158, 4294901760
        %v2244 = vsub.f32 %v2158, %v2243
        %v2245 = vand.u32 %v2244, 4294901760
        %v2246 = vsub.f32 %v2244, %v2245
        %v2247 = vand.u32 %v2246, 4294901760
        %2248 = vmatmul.mubr.f32.gmra.mxu0 %v2247
        %v2249 = vpop.f32.mrf.mxu0
        %v2250 = vadd.f32 0.0, %v2249
        %v2251 = vpop.f32.mrf.mxu0
        %2252 = vmatprep.mubr.f32.mxu0 0.0
        %v2253 = vand.u32 %v2161, 4294901760
        %v2254 = vsub.f32 %v2161, %v2253
        %v2255 = vand.u32 %v2254, 4294901760
        %v2256 = vsub.f32 %v2254, %v2255
        %v2257 = vand.u32 %v2256, 4294901760
        %2258 = vmatmul.mubr.f32.gmra.mxu0 %v2257
        %v2259 = vpop.f32.mrf.mxu0
        %v2260 = vadd.f32 0.0, %v2259
        %v2261 = vpop.f32.mrf.mxu0
        %2262 = vmatprep.mubr.f32.mxu0 0.0
        %v2263 = vand.u32 %v2164, 4294901760
        %v2264 = vsub.f32 %v2164, %v2263
        %v2265 = vand.u32 %v2264, 4294901760
        %v2266 = vsub.f32 %v2264, %v2265
        %v2267 = vand.u32 %v2266, 4294901760
        %2268 = vmatmul.mubr.f32.gmra.mxu0 %v2267
        %v2269 = vpop.f32.mrf.mxu0
        %v2270 = vadd.f32 0.0, %v2269
        %v2271 = vpop.f32.mrf.mxu0
        %2272 = vdwg.mxu0
        %2273 = vmatprep.subr.mxu0 0.0
        %2274 = vmatpush1.msra.mxu0 0.0
        %2275 = vmatprep.subr.mxu0 0.0
        %2276 = vmatpush1.msra.mxu0 0.0
        %2277 = vmatprep.subr.mxu0 0.0
        %2278 = vmatpush1.msra.mxu0 0.0
        %2279 = vmatprep.subr.mxu0 0.0
        %2280 = vmatpush1.msra.mxu0 0.0
        %2281 = vmatprep.subr.mxu0 0.0
        %2282 = vmatpush1.msra.mxu0 0.0
        %2283 = vmatprep.subr.mxu0 0.0
        %2284 = vmatpush1.msra.mxu0 0.0
        %2285 = vmatprep.subr.mxu0 0.0
        %2286 = vmatpush1.msra.mxu0 0.0
        %2287 = vmatprep.subr.mxu0 0.0
        %2288 = vmatpush1.msra.mxu0 0.0
        %2289 = vmatprep.subr.mxu0 0.0
        %2290 = vmatpush1.msra.mxu0 0.0
        %2291 = vmatprep.subr.mxu0 0.0
        %2292 = vmatpush1.msra.mxu0 0.0
        %2293 = vmatprep.subr.mxu0 0.0
        %2294 = vmatpush1.msra.mxu0 0.0
        %2295 = vmatprep.subr.mxu0 0.0
        %2296 = vmatpush1.msra.mxu0 0.0
        %2297 = vmatprep.subr.mxu0 0.0
        %2298 = vmatpush1.msra.mxu0 0.0
        %2299 = vmatprep.subr.mxu0 0.0
        %2300 = vmatpush1.msra.mxu0 0.0
        %2301 = vmatprep.subr.mxu0 0.0
        %v2302 = vand.u32 %v202, 4294901760
        %v2303 = vsub.f32 %v202, %v2302
        %v2304 = vand.u32 %v2303, 4294901760
        %v2305 = vsub.f32 %v2303, %v2304
        %v2306 = vand.u32 %v2305, 4294901760
        %2307 = vmatpush1.msra.mxu0 %v2306
        %2308 = vmatprep.subr.mxu0 0.0
        %v2309 = vand.u32 %v201, 4294901760
        %v2310 = vsub.f32 %v201, %v2309
        %v2311 = vand.u32 %v2310, 4294901760
        %v2312 = vsub.f32 %v2310, %v2311
        %v2313 = vand.u32 %v2312, 4294901760
        %2314 = vmatpush1.msra.mxu0 %v2313
        %2315 = vmatprep.subr.mxu0 0.0
        %2316 = vmatpush2.msra.mxu0 0.0
        %2317 = vmatprep.subr.mxu0 0.0
        %2318 = vmatpush2.msra.mxu0 0.0
        %2319 = vmatprep.subr.mxu0 0.0
        %2320 = vmatpush2.msra.mxu0 0.0
        %2321 = vmatprep.subr.mxu0 0.0
        %2322 = vmatpush2.msra.mxu0 0.0
        %2323 = vmatprep.subr.mxu0 0.0
        %2324 = vmatpush2.msra.mxu0 0.0
        %2325 = vmatprep.subr.mxu0 0.0
        %2326 = vmatpush2.msra.mxu0 0.0
        %2327 = vmatprep.subr.mxu0 0.0
        %2328 = vmatpush2.msra.mxu0 0.0
        %2329 = vmatprep.subr.mxu0 0.0
        %2330 = vmatpush2.msra.mxu0 0.0
        %2331 = vmatprep.subr.mxu0 0.0
        %2332 = vmatpush2.msra.mxu0 0.0
        %2333 = vmatprep.subr.mxu0 0.0
        %2334 = vmatpush2.msra.mxu0 0.0
        %2335 = vmatprep.subr.mxu0 0.0
        %2336 = vmatpush2.msra.mxu0 0.0
        %2337 = vmatprep.subr.mxu0 0.0
        %2338 = vmatpush2.msra.mxu0 0.0
        %2339 = vmatprep.subr.mxu0 0.0
        %2340 = vmatpush2.msra.mxu0 0.0
        %2341 = vmatprep.subr.mxu0 0.0
        %2342 = vmatpush2.msra.mxu0 0.0
        %2343 = vmatprep.subr.mxu0 0.0
        %2344 = vmatpush2.msra.mxu0 0.0
        %2345 = vmatprep.subr.mxu0 0.0
        %2346 = vmatpush2.msra.mxu0 0.0
        %2347 = vmatprep.mubr.f32.mxu0 0.0
        %v2348 = vand.u32 %v2155, 4294901760
        %2349 = vmatmul.mubr.f32.gmra.mxu0 %v2348
        %v2350 = vpop.f32.mrf.mxu0
        %v2351 = vadd.f32 %v2240, %v2350
        %v2352 = vpop.f32.mrf.mxu0
        %2353 = vmatprep.mubr.f32.mxu0 0.0
        %v2354 = vand.u32 %v2158, 4294901760
        %2355 = vmatmul.mubr.f32.gmra.mxu0 %v2354
        %v2356 = vpop.f32.mrf.mxu0
        %v2357 = vadd.f32 %v2250, %v2356
        %v2358 = vpop.f32.mrf.mxu0
        %2359 = vmatprep.mubr.f32.mxu0 0.0
        %v2360 = vand.u32 %v2161, 4294901760
        %2361 = vmatmul.mubr.f32.gmra.mxu0 %v2360
        %v2362 = vpop.f32.mrf.mxu0
        %v2363 = vadd.f32 %v2260, %v2362
        %v2364 = vpop.f32.mrf.mxu0
        %2365 = vmatprep.mubr.f32.mxu0 0.0
        %v2366 = vand.u32 %v2164, 4294901760
        %2367 = vmatmul.mubr.f32.gmra.mxu0 %v2366
        %v2368 = vpop.f32.mrf.mxu0
        %v2369 = vadd.f32 %v2270, %v2368
        %v2370 = vpop.f32.mrf.mxu0
        %2371 = vdwg.mxu0
        %2372 = vmatprep.subr.mxu0 0.0
        %2373 = vmatpush1.msra.mxu0 0.0
        %2374 = vmatprep.subr.mxu0 0.0
        %2375 = vmatpush1.msra.mxu0 0.0
        %2376 = vmatprep.subr.mxu0 0.0
        %2377 = vmatpush1.msra.mxu0 0.0
        %2378 = vmatprep.subr.mxu0 0.0
        %2379 = vmatpush1.msra.mxu0 0.0
        %2380 = vmatprep.subr.mxu0 0.0
        %2381 = vmatpush1.msra.mxu0 0.0
        %2382 = vmatprep.subr.mxu0 0.0
        %2383 = vmatpush1.msra.mxu0 0.0
        %2384 = vmatprep.subr.mxu0 0.0
        %2385 = vmatpush1.msra.mxu0 0.0
        %2386 = vmatprep.subr.mxu0 0.0
        %2387 = vmatpush1.msra.mxu0 0.0
        %2388 = vmatprep.subr.mxu0 0.0
        %2389 = vmatpush1.msra.mxu0 0.0
        %2390 = vmatprep.subr.mxu0 0.0
        %2391 = vmatpush1.msra.mxu0 0.0
        %2392 = vmatprep.subr.mxu0 0.0
        %2393 = vmatpush1.msra.mxu0 0.0
        %2394 = vmatprep.subr.mxu0 0.0
        %2395 = vmatpush1.msra.mxu0 0.0
        %2396 = vmatprep.subr.mxu0 0.0
        %2397 = vmatpush1.msra.mxu0 0.0
        %2398 = vmatprep.subr.mxu0 0.0
        %2399 = vmatpush1.msra.mxu0 0.0
        %2400 = vmatprep.subr.mxu0 0.0
        %v2401 = vand.u32 %v202, 4294901760
        %v2402 = vsub.f32 %v202, %v2401
        %2403 = vmatpush1.msra.mxu0 %v2402
        %2404 = vmatprep.subr.mxu0 0.0
        %v2405 = vand.u32 %v201, 4294901760
        %v2406 = vsub.f32 %v201, %v2405
        %2407 = vmatpush1.msra.mxu0 %v2406
        %2408 = vmatprep.subr.mxu0 0.0
        %2409 = vmatpush2.msra.mxu0 0.0
        %2410 = vmatprep.subr.mxu0 0.0
        %2411 = vmatpush2.msra.mxu0 0.0
        %2412 = vmatprep.subr.mxu0 0.0
        %2413 = vmatpush2.msra.mxu0 0.0
        %2414 = vmatprep.subr.mxu0 0.0
        %2415 = vmatpush2.msra.mxu0 0.0
        %2416 = vmatprep.subr.mxu0 0.0
        %2417 = vmatpush2.msra.mxu0 0.0
        %2418 = vmatprep.subr.mxu0 0.0
        %2419 = vmatpush2.msra.mxu0 0.0
        %2420 = vmatprep.subr.mxu0 0.0
        %2421 = vmatpush2.msra.mxu0 0.0
        %2422 = vmatprep.subr.mxu0 0.0
        %2423 = vmatpush2.msra.mxu0 0.0
        %2424 = vmatprep.subr.mxu0 0.0
        %2425 = vmatpush2.msra.mxu0 0.0
        %2426 = vmatprep.subr.mxu0 0.0
        %2427 = vmatpush2.msra.mxu0 0.0
        %2428 = vmatprep.subr.mxu0 0.0
        %2429 = vmatpush2.msra.mxu0 0.0
        %2430 = vmatprep.subr.mxu0 0.0
        %2431 = vmatpush2.msra.mxu0 0.0
        %2432 = vmatprep.subr.mxu0 0.0
        %2433 = vmatpush2.msra.mxu0 0.0
        %2434 = vmatprep.subr.mxu0 0.0
        %2435 = vmatpush2.msra.mxu0 0.0
        %2436 = vmatprep.subr.mxu0 0.0
        %2437 = vmatpush2.msra.mxu0 0.0
        %2438 = vmatprep.subr.mxu0 0.0
        %2439 = vmatpush2.msra.mxu0 0.0
        %2440 = vmatprep.mubr.f32.mxu0 0.0
        %v2441 = vand.u32 %v2155, 4294901760
        %v2442 = vsub.f32 %v2155, %v2441
        %2443 = vmatmul.mubr.f32.gmra.mxu0 %v2442
        %v2444 = vpop.f32.mrf.mxu0
        %v2445 = vadd.f32 %v2351, %v2444
        %v2446 = vpop.f32.mrf.mxu0
        %2447 = vmatprep.mubr.f32.mxu0 0.0
        %v2448 = vand.u32 %v2158, 4294901760
        %v2449 = vsub.f32 %v2158, %v2448
        %2450 = vmatmul.mubr.f32.gmra.mxu0 %v2449
        %v2451 = vpop.f32.mrf.mxu0
        %v2452 = vadd.f32 %v2357, %v2451
        %v2453 = vpop.f32.mrf.mxu0
        %2454 = vmatprep.mubr.f32.mxu0 0.0
        %v2455 = vand.u32 %v2161, 4294901760
        %v2456 = vsub.f32 %v2161, %v2455
        %2457 = vmatmul.mubr.f32.gmra.mxu0 %v2456
        %v2458 = vpop.f32.mrf.mxu0
        %v2459 = vadd.f32 %v2363, %v2458
        %v2460 = vpop.f32.mrf.mxu0
        %2461 = vmatprep.mubr.f32.mxu0 0.0
        %v2462 = vand.u32 %v2164, 4294901760
        %v2463 = vsub.f32 %v2164, %v2462
        %2464 = vmatmul.mubr.f32.gmra.mxu0 %v2463
        %v2465 = vpop.f32.mrf.mxu0
        %v2466 = vadd.f32 %v2369, %v2465
        %v2467 = vpop.f32.mrf.mxu0
        %2468 = vdwg.mxu0
        %2469 = vmatprep.subr.mxu0 0.0
        %2470 = vmatpush1.msra.mxu0 0.0
        %2471 = vmatprep.subr.mxu0 0.0
        %2472 = vmatpush1.msra.mxu0 0.0
        %2473 = vmatprep.subr.mxu0 0.0
        %2474 = vmatpush1.msra.mxu0 0.0
        %2475 = vmatprep.subr.mxu0 0.0
        %2476 = vmatpush1.msra.mxu0 0.0
        %2477 = vmatprep.subr.mxu0 0.0
        %2478 = vmatpush1.msra.mxu0 0.0
        %2479 = vmatprep.subr.mxu0 0.0
        %2480 = vmatpush1.msra.mxu0 0.0
        %2481 = vmatprep.subr.mxu0 0.0
        %2482 = vmatpush1.msra.mxu0 0.0
        %2483 = vmatprep.subr.mxu0 0.0
        %2484 = vmatpush1.msra.mxu0 0.0
        %2485 = vmatprep.subr.mxu0 0.0
        %2486 = vmatpush1.msra.mxu0 0.0
        %2487 = vmatprep.subr.mxu0 0.0
        %2488 = vmatpush1.msra.mxu0 0.0
        %2489 = vmatprep.subr.mxu0 0.0
        %2490 = vmatpush1.msra.mxu0 0.0
        %2491 = vmatprep.subr.mxu0 0.0
        %2492 = vmatpush1.msra.mxu0 0.0
        %2493 = vmatprep.subr.mxu0 0.0
        %2494 = vmatpush1.msra.mxu0 0.0
        %2495 = vmatprep.subr.mxu0 0.0
        %2496 = vmatpush1.msra.mxu0 0.0
        %2497 = vmatprep.subr.mxu0 0.0
        %v2498 = vand.u32 %v202, 4294901760
        %2499 = vmatpush1.msra.mxu0 %v2498
        %2500 = vmatprep.subr.mxu0 0.0
        %v2501 = vand.u32 %v201, 4294901760
        %2502 = vmatpush1.msra.mxu0 %v2501
        %2503 = vmatprep.subr.mxu0 0.0
        %2504 = vmatpush2.msra.mxu0 0.0
        %2505 = vmatprep.subr.mxu0 0.0
        %2506 = vmatpush2.msra.mxu0 0.0
        %2507 = vmatprep.subr.mxu0 0.0
        %2508 = vmatpush2.msra.mxu0 0.0
        %2509 = vmatprep.subr.mxu0 0.0
        %2510 = vmatpush2.msra.mxu0 0.0
        %2511 = vmatprep.subr.mxu0 0.0
        %2512 = vmatpush2.msra.mxu0 0.0
        %2513 = vmatprep.subr.mxu0 0.0
        %2514 = vmatpush2.msra.mxu0 0.0
        %2515 = vmatprep.subr.mxu0 0.0
        %2516 = vmatpush2.msra.mxu0 0.0
        %2517 = vmatprep.subr.mxu0 0.0
        %2518 = vmatpush2.msra.mxu0 0.0
        %2519 = vmatprep.subr.mxu0 0.0
        %2520 = vmatpush2.msra.mxu0 0.0
        %2521 = vmatprep.subr.mxu0 0.0
        %2522 = vmatpush2.msra.mxu0 0.0
        %2523 = vmatprep.subr.mxu0 0.0
        %2524 = vmatpush2.msra.mxu0 0.0
        %2525 = vmatprep.subr.mxu0 0.0
        %2526 = vmatpush2.msra.mxu0 0.0
        %2527 = vmatprep.subr.mxu0 0.0
        %2528 = vmatpush2.msra.mxu0 0.0
        %2529 = vmatprep.subr.mxu0 0.0
        %2530 = vmatpush2.msra.mxu0 0.0
        %2531 = vmatprep.subr.mxu0 0.0
        %2532 = vmatpush2.msra.mxu0 0.0
        %2533 = vmatprep.subr.mxu0 0.0
        %2534 = vmatpush2.msra.mxu0 0.0
        %2535 = vmatprep.mubr.f32.mxu0 0.0
        %v2536 = vand.u32 %v2155, 4294901760
        %v2537 = vsub.f32 %v2155, %v2536
        %v2538 = vand.u32 %v2537, 4294901760
        %2539 = vmatmul.mubr.f32.gmra.mxu0 %v2538
        %v2540 = vpop.f32.mrf.mxu0
        %v2541 = vadd.f32 %v2445, %v2540
        %v2542 = vpop.f32.mrf.mxu0
        %2543 = vmatprep.mubr.f32.mxu0 0.0
        %v2544 = vand.u32 %v2158, 4294901760
        %v2545 = vsub.f32 %v2158, %v2544
        %v2546 = vand.u32 %v2545, 4294901760
        %2547 = vmatmul.mubr.f32.gmra.mxu0 %v2546
        %v2548 = vpop.f32.mrf.mxu0
        %v2549 = vadd.f32 %v2452, %v2548
        %v2550 = vpop.f32.mrf.mxu0
        %2551 = vmatprep.mubr.f32.mxu0 0.0
        %v2552 = vand.u32 %v2161, 4294901760
        %v2553 = vsub.f32 %v2161, %v2552
        %v2554 = vand.u32 %v2553, 4294901760
        %2555 = vmatmul.mubr.f32.gmra.mxu0 %v2554
        %v2556 = vpop.f32.mrf.mxu0
        %v2557 = vadd.f32 %v2459, %v2556
        %v2558 = vpop.f32.mrf.mxu0
        %2559 = vmatprep.mubr.f32.mxu0 0.0
        %v2560 = vand.u32 %v2164, 4294901760
        %v2561 = vsub.f32 %v2164, %v2560
        %v2562 = vand.u32 %v2561, 4294901760
        %2563 = vmatmul.mubr.f32.gmra.mxu0 %v2562
        %v2564 = vpop.f32.mrf.mxu0
        %v2565 = vadd.f32 %v2466, %v2564
        %v2566 = vpop.f32.mrf.mxu0
        %2567 = vdwg.mxu0
        %2568 = vmatprep.subr.mxu0 0.0
        %2569 = vmatpush1.msra.mxu0 0.0
        %2570 = vmatprep.subr.mxu0 0.0
        %2571 = vmatpush1.msra.mxu0 0.0
        %2572 = vmatprep.subr.mxu0 0.0
        %2573 = vmatpush1.msra.mxu0 0.0
        %2574 = vmatprep.subr.mxu0 0.0
        %2575 = vmatpush1.msra.mxu0 0.0
        %2576 = vmatprep.subr.mxu0 0.0
        %2577 = vmatpush1.msra.mxu0 0.0
        %2578 = vmatprep.subr.mxu0 0.0
        %2579 = vmatpush1.msra.mxu0 0.0
        %2580 = vmatprep.subr.mxu0 0.0
        %2581 = vmatpush1.msra.mxu0 0.0
        %2582 = vmatprep.subr.mxu0 0.0
        %2583 = vmatpush1.msra.mxu0 0.0
        %2584 = vmatprep.subr.mxu0 0.0
        %2585 = vmatpush1.msra.mxu0 0.0
        %2586 = vmatprep.subr.mxu0 0.0
        %2587 = vmatpush1.msra.mxu0 0.0
        %2588 = vmatprep.subr.mxu0 0.0
        %2589 = vmatpush1.msra.mxu0 0.0
        %2590 = vmatprep.subr.mxu0 0.0
        %2591 = vmatpush1.msra.mxu0 0.0
        %2592 = vmatprep.subr.mxu0 0.0
        %2593 = vmatpush1.msra.mxu0 0.0
        %2594 = vmatprep.subr.mxu0 0.0
        %2595 = vmatpush1.msra.mxu0 0.0
        %2596 = vmatprep.subr.mxu0 0.0
        %v2597 = vand.u32 %v202, 4294901760
        %v2598 = vsub.f32 %v202, %v2597
        %v2599 = vand.u32 %v2598, 4294901760
        %2600 = vmatpush1.msra.mxu0 %v2599
        %2601 = vmatprep.subr.mxu0 0.0
        %v2602 = vand.u32 %v201, 4294901760
        %v2603 = vsub.f32 %v201, %v2602
        %v2604 = vand.u32 %v2603, 4294901760
        %2605 = vmatpush1.msra.mxu0 %v2604
        %2606 = vmatprep.subr.mxu0 0.0
        %2607 = vmatpush2.msra.mxu0 0.0
        %2608 = vmatprep.subr.mxu0 0.0
        %2609 = vmatpush2.msra.mxu0 0.0
        %2610 = vmatprep.subr.mxu0 0.0
        %2611 = vmatpush2.msra.mxu0 0.0
        %2612 = vmatprep.subr.mxu0 0.0
        %2613 = vmatpush2.msra.mxu0 0.0
        %2614 = vmatprep.subr.mxu0 0.0
        %2615 = vmatpush2.msra.mxu0 0.0
        %2616 = vmatprep.subr.mxu0 0.0
        %2617 = vmatpush2.msra.mxu0 0.0
        %2618 = vmatprep.subr.mxu0 0.0
        %2619 = vmatpush2.msra.mxu0 0.0
        %2620 = vmatprep.subr.mxu0 0.0
        %2621 = vmatpush2.msra.mxu0 0.0
        %2622 = vmatprep.subr.mxu0 0.0
        %2623 = vmatpush2.msra.mxu0 0.0
        %2624 = vmatprep.subr.mxu0 0.0
        %2625 = vmatpush2.msra.mxu0 0.0
        %2626 = vmatprep.subr.mxu0 0.0
        %2627 = vmatpush2.msra.mxu0 0.0
        %2628 = vmatprep.subr.mxu0 0.0
        %2629 = vmatpush2.msra.mxu0 0.0
        %2630 = vmatprep.subr.mxu0 0.0
        %2631 = vmatpush2.msra.mxu0 0.0
        %2632 = vmatprep.subr.mxu0 0.0
        %2633 = vmatpush2.msra.mxu0 0.0
        %2634 = vmatprep.subr.mxu0 0.0
        %2635 = vmatpush2.msra.mxu0 0.0
        %2636 = vmatprep.subr.mxu0 0.0
        %2637 = vmatpush2.msra.mxu0 0.0
        %2638 = vmatprep.mubr.f32.mxu0 0.0
        %v2639 = vand.u32 %v2155, 4294901760
        %2640 = vmatmul.mubr.f32.gmra.mxu0 %v2639
        %v2641 = vpop.f32.mrf.mxu0
        %v2642 = vadd.f32 %v2541, %v2641
        %v2643 = vpop.f32.mrf.mxu0
        %2644 = vmatprep.mubr.f32.mxu0 0.0
        %v2645 = vand.u32 %v2158, 4294901760
        %2646 = vmatmul.mubr.f32.gmra.mxu0 %v2645
        %v2647 = vpop.f32.mrf.mxu0
        %v2648 = vadd.f32 %v2549, %v2647
        %v2649 = vpop.f32.mrf.mxu0
        %2650 = vmatprep.mubr.f32.mxu0 0.0
        %v2651 = vand.u32 %v2161, 4294901760
        %2652 = vmatmul.mubr.f32.gmra.mxu0 %v2651
        %v2653 = vpop.f32.mrf.mxu0
        %v2654 = vadd.f32 %v2557, %v2653
        %v2655 = vpop.f32.mrf.mxu0
        %2656 = vmatprep.mubr.f32.mxu0 0.0
        %v2657 = vand.u32 %v2164, 4294901760
        %2658 = vmatmul.mubr.f32.gmra.mxu0 %v2657
        %v2659 = vpop.f32.mrf.mxu0
        %v2660 = vadd.f32 %v2565, %v2659
        %v2661 = vpop.f32.mrf.mxu0
        %2662 = vdwg.mxu0
        %2663 = vmatprep.subr.mxu0 0.0
        %2664 = vmatpush1.msra.mxu0 0.0
        %2665 = vmatprep.subr.mxu0 0.0
        %2666 = vmatpush1.msra.mxu0 0.0
        %2667 = vmatprep.subr.mxu0 0.0
        %2668 = vmatpush1.msra.mxu0 0.0
        %2669 = vmatprep.subr.mxu0 0.0
        %2670 = vmatpush1.msra.mxu0 0.0
        %2671 = vmatprep.subr.mxu0 0.0
        %2672 = vmatpush1.msra.mxu0 0.0
        %2673 = vmatprep.subr.mxu0 0.0
        %2674 = vmatpush1.msra.mxu0 0.0
        %2675 = vmatprep.subr.mxu0 0.0
        %2676 = vmatpush1.msra.mxu0 0.0
        %2677 = vmatprep.subr.mxu0 0.0
        %2678 = vmatpush1.msra.mxu0 0.0
        %2679 = vmatprep.subr.mxu0 0.0
        %2680 = vmatpush1.msra.mxu0 0.0
        %2681 = vmatprep.subr.mxu0 0.0
        %2682 = vmatpush1.msra.mxu0 0.0
        %2683 = vmatprep.subr.mxu0 0.0
        %2684 = vmatpush1.msra.mxu0 0.0
        %2685 = vmatprep.subr.mxu0 0.0
        %2686 = vmatpush1.msra.mxu0 0.0
        %2687 = vmatprep.subr.mxu0 0.0
        %2688 = vmatpush1.msra.mxu0 0.0
        %2689 = vmatprep.subr.mxu0 0.0
        %2690 = vmatpush1.msra.mxu0 0.0
        %2691 = vmatprep.subr.mxu0 0.0
        %v2692 = vand.u32 %v202, 4294901760
        %2693 = vmatpush1.msra.mxu0 %v2692
        %2694 = vmatprep.subr.mxu0 0.0
        %v2695 = vand.u32 %v201, 4294901760
        %2696 = vmatpush1.msra.mxu0 %v2695
        %2697 = vmatprep.subr.mxu0 0.0
        %2698 = vmatpush2.msra.mxu0 0.0
        %2699 = vmatprep.subr.mxu0 0.0
        %2700 = vmatpush2.msra.mxu0 0.0
        %2701 = vmatprep.subr.mxu0 0.0
        %2702 = vmatpush2.msra.mxu0 0.0
        %2703 = vmatprep.subr.mxu0 0.0
        %2704 = vmatpush2.msra.mxu0 0.0
        %2705 = vmatprep.subr.mxu0 0.0
        %2706 = vmatpush2.msra.mxu0 0.0
        %2707 = vmatprep.subr.mxu0 0.0
        %2708 = vmatpush2.msra.mxu0 0.0
        %2709 = vmatprep.subr.mxu0 0.0
        %2710 = vmatpush2.msra.mxu0 0.0
        %2711 = vmatprep.subr.mxu0 0.0
        %2712 = vmatpush2.msra.mxu0 0.0
        %2713 = vmatprep.subr.mxu0 0.0
        %2714 = vmatpush2.msra.mxu0 0.0
        %2715 = vmatprep.subr.mxu0 0.0
        %2716 = vmatpush2.msra.mxu0 0.0
        %2717 = vmatprep.subr.mxu0 0.0
        %2718 = vmatpush2.msra.mxu0 0.0
        %2719 = vmatprep.subr.mxu0 0.0
        %2720 = vmatpush2.msra.mxu0 0.0
        %2721 = vmatprep.subr.mxu0 0.0
        %2722 = vmatpush2.msra.mxu0 0.0
        %2723 = vmatprep.subr.mxu0 0.0
        %2724 = vmatpush2.msra.mxu0 0.0
        %2725 = vmatprep.subr.mxu0 0.0
        %2726 = vmatpush2.msra.mxu0 0.0
        %2727 = vmatprep.subr.mxu0 0.0
        %2728 = vmatpush2.msra.mxu0 0.0
        %2729 = vmatprep.mubr.f32.mxu0 0.0
        %v2730 = vand.u32 %v2155, 4294901760
        %2731 = vmatmul.mubr.f32.gmra.mxu0 %v2730
        %v2732 = vpop.f32.mrf.mxu0
        %v2733 = vadd.f32 %v2642, %v2732
        %v2734 = vpop.f32.mrf.mxu0
        %2735 = vmatprep.mubr.f32.mxu0 0.0
        %v2736 = vand.u32 %v2158, 4294901760
        %2737 = vmatmul.mubr.f32.gmra.mxu0 %v2736
        %v2738 = vpop.f32.mrf.mxu0
        %v2739 = vadd.f32 %v2648, %v2738
        %v2740 = vpop.f32.mrf.mxu0
        %2741 = vmatprep.mubr.f32.mxu0 0.0
        %v2742 = vand.u32 %v2161, 4294901760
        %2743 = vmatmul.mubr.f32.gmra.mxu0 %v2742
        %v2744 = vpop.f32.mrf.mxu0
        %v2745 = vadd.f32 %v2654, %v2744
        %v2746 = vpop.f32.mrf.mxu0
        %2747 = vmatprep.mubr.f32.mxu0 0.0
        %v2748 = vand.u32 %v2164, 4294901760
        %2749 = vmatmul.mubr.f32.gmra.mxu0 %v2748
        %v2750 = vpop.f32.mrf.mxu0
        %v2751 = vadd.f32 %v2660, %v2750
        %v2752 = vpop.f32.mrf.mxu0
        %2753 = vdwg.mxu0
        %2758 = vrot.lane.b32.xlu0 %v2733, 16
        %v2759 = vpop.permute.xlu0 %2758
        %2760 = vrot.lane.b32.xlu0 %v2739, 16
        %v2761 = vpop.permute.xlu0 %2760
        %2762 = vrot.lane.b32.xlu0 %v2745, 16
        %v2763 = vpop.permute.xlu0 %2762
        %2764 = vrot.lane.b32.xlu0 %v2751, 16
        %v2765 = vpop.permute.xlu0 %2764
        %2770 = vst.msk [vmem:[%s2119] sm:$0xff] %vm1484, %v2759
        %2771 = vst.msk [vmem:[%s2119 + $0x10] sm:$0xff] %vm1484, %v2761
        %2772 = vst.msk [vmem:[%s2119 + $0x20] sm:$0xff] %vm1484, %v2763
        %2773 = vst.msk [vmem:[%s2119 + $0x30] sm:$0xff] %vm1484, %v2765
        %s2774 = sand.u32 %s98, 1
        %s2775 = scalar_lea.sflag [#allocation3], %s2774
        %s2776 = sand.u32 %s98, 1
        %s2777 = smul.addr %s2776, 64
        %s2778 = scalar_lea.vmem [#allocation2], %s2777
        // Predicated region
        $region29: #{tpu_custom_call.1} parent=27 // pred_check
          %p2779 = pneg %p108
        $region30: #{tpu_custom_call.1} parent=27 // pred_check_branch
          %2781 = sbr.rel (%p2779) target = $region32
        $region31: #{tpu_custom_call.1} parent=27 // pred_region
          %s2782 = smul.u32 4, %s23
          %s2784 = ssub.s32 1024, 1024
          %2785 = vsyncadd %s2775, %s2784
          %s2786 = smul.addr %s2782, 2
          %s2787 = smul.addr %s22, 8
          %s2788 = sadd.s32 %s2786, %s2787
          %s2789 = smul.addr %s21, 16
          %s2790 = sadd.s32 %s2788, %s2789
          %s2791 = smul.addr %s2790, 128
          %s2792 = scalar_lea.hbm %s2, %s2791
          %s2793 = sshll.u32 %s2778, 4
          %s2794 = int_to_ptr.vmem [resolvable:$true] %s2793
          %2799 = dma.vmem_to_hbm [thread:$0]  %s2794, 1024, %s2792, %s2775, 128, 128, 8
        $region32: #{tpu_custom_call.1} parent=27 // pred_fallthru
          _
      $region28: #{tpu_custom_call.1} parent=5 // pred_fallthru
        _
      %p2800 = scmp.le.s32.totalorder 2, %s11
      // Predicated region
      $region33: #{tpu_custom_call.1} parent=5 // pred_check
        %p2801 = pneg %p2800
      $region34: #{tpu_custom_call.1} parent=5 // pred_check_branch
        %2803 = sbr.rel (%p2801) target = $region36
      $region35: #{tpu_custom_call.1} parent=5 // pred_region
        %s2804 = ssub.s32 %s11, 2
        // Predicated region
        $region37: #{tpu_custom_call.1} parent=35 // pred_check
          %p2805 = pneg %p114
        $region38: #{tpu_custom_call.1} parent=35 // pred_check_branch
          %2807 = sbr.rel (%p2805) target = $region40
        $region39: #{tpu_custom_call.1} parent=35 // pred_region
          %s2808 = sand.u32 %s99, 1
          %s2809 = scalar_lea.sflag [#allocation3], %s2808
          %s2810 = sand.u32 %s99, 1
          %s2811 = smul.addr %s2810, 64
          %s2812 = scalar_lea.vmem [#allocation2], %s2811
          %2813 = dma.done %s2809, 1024
        $region40: #{tpu_custom_call.1} parent=35 // pred_fallthru
          _
      $region36: #{tpu_custom_call.1} parent=5 // pred_fallthru
        _
    $region6: #{tpu_custom_call.1} parent=1 // loop_footer
      %s15 = sadd.s32 1, %s11
    $region7: #{tpu_custom_call.1} parent=1 // loop_footer_branch
      %10 = sbr.rel target = $region3
    $region8: #{tpu_custom_call.1} parent=1 // loop_exit
      _
    %2814 = vsyncpa [#allocation3], 1
    %s2815 = scalar_lea.sflag [#allocation3], 1
    %2816 = vsyncpa %s2815, 1

</llo_original>
